<compile_context>
chip_gen: v5e
topology: v5e:2x2
jax: 0.10.0
libtpu: 0.0.40
codegen_flags: <defaults>
</compile_context>

<pallas_src>
import jax
import jax.numpy as jnp
from jax.experimental import pallas as pl
from jax.experimental.pallas import tpu as pltpu


_CHUNK = 256  # table rows gathered per one-hot matmul step (MXU-native K)


# ----------------------------------------------------------------------------
# Pallas kernel: chunked in-VMEM one-hot gather + GMF head + sigmoid
# ----------------------------------------------------------------------------
def _gmf_forward_kernel(uid_ref, iid_ref, iota_ref, utab_ref, itab_ref,
                        w_ref, b_ref, o_ref):
    # uid_ref, iid_ref : (1, TB)           int32 user / item ids, batch on lanes
    # iota_ref         : (_CHUNK, 1)       int32 [0.._CHUNK), grid invariant
    # utab_ref         : (D, n_users_pad)  bf16 user table (VMEM resident)
    # itab_ref         : (D, n_items_pad)  bf16 item table (VMEM resident)
    # w_ref            : (1, D)            f32 output projection row
    # b_ref            : (1,)              f32 output bias (SMEM scalar)
    # o_ref            : (1, TB)           f32 sigmoid predictions (lane dense)
    tab_dtype = utab_ref.dtype
    d = utab_ref.shape[0]
    tb = uid_ref.shape[1]

    iota = iota_ref[...]                                   # (_CHUNK, 1)
    uid = uid_ref[...]                                     # (1, TB)
    iid = iid_ref[...]

    def gather(tab_ref, ids):
        # Chunked one-hot gather: (D, chunk) @ (chunk, TB) -> (D, TB) f32.
        # One-hot values are exact 0/1 in bf16, so the f32 accumulation
        # reproduces the bf16 table rows exactly.
        n_chunks = tab_ref.shape[1] // _CHUNK
        acc = jnp.zeros((d, tb), jnp.float32)
        for c in range(n_chunks):                          # static, unrolled
            oh = (iota == (ids - c * _CHUNK)).astype(tab_dtype)   # (_CHUNK, TB)
            acc = acc + jnp.dot(tab_ref[:, c * _CHUNK:(c + 1) * _CHUNK], oh,
                                preferred_element_type=jnp.float32)
        return acc

    u = gather(utab_ref, uid)                              # (D, TB) f32
    v = gather(itab_ref, iid)                              # (D, TB) f32

    # Weighted D-reduction on the MXU (it has slack; the VPU is the binding
    # slot): logits = W^T (u * v) + b, shape (1, TB).
    logits = jnp.dot(w_ref[...], u * v,
                     preferred_element_type=jnp.float32) + b_ref[0]
    o_ref[...] = jax.nn.sigmoid(logits).astype(o_ref.dtype)


def _choose_tile_b(batch):
    """Generation-aware tile size: >= 2 even tiles (v7x megacore) but few,
    large tiles (v5e/v6e single-TC), capped at 2048 lanes."""
    lanes = pl.cdiv(batch, 128) * 128
    if lanes <= 128:
        return 128
    max_tile = 2048
    n_tiles = max(2, pl.cdiv(lanes, max_tile))
    n_tiles += n_tiles % 2                      # even tile count
    tile = pl.cdiv(lanes // 128, n_tiles) * 128
    return max(tile, 128)


def gmf_forward(user_input, item_input, user_emb, item_emb, w_out, b_out,
                *, tile_b=None, table_dtype=jnp.bfloat16):
    """forward(user_idx, item_idx) -> (B, 1) float32 probabilities."""
    n_users, emb_dim = user_emb.shape
    n_items, _ = item_emb.shape
    batch = user_input.shape[0]

    tile_b = _choose_tile_b(batch) if tile_b is None else tile_b
    assert tile_b % 128 == 0, "tile_b must be lane-dense (multiple of 128)"

    # Clamp ids (matches jnp.take clamping; avoids silent sigmoid(bias) for
    # out-of-range ids), then pad the batch; padded lanes reuse id 0 and are
    # sliced off after the call.
    b_pad = pl.cdiv(batch, tile_b) * tile_b
    uid = jnp.clip(user_input.astype(jnp.int32), 0, n_users - 1)
    iid = jnp.clip(item_input.astype(jnp.int32), 0, n_items - 1)
    uid = jnp.pad(uid, (0, b_pad - batch))[None, :]
    iid = jnp.pad(iid, (0, b_pad - batch))[None, :]

    # Tables transposed (D on sublanes -> gathered tile comes out batch-on-
    # lanes), cast to bf16, and zero-padded to a multiple of the gather chunk.
    # Padded columns are never selected (ids are clamped to < n).
    n_users_pad = pl.cdiv(n_users, _CHUNK) * _CHUNK
    n_items_pad = pl.cdiv(n_items, _CHUNK) * _CHUNK
    utab = jnp.pad(user_emb.astype(table_dtype).T,
                   ((0, 0), (0, n_users_pad - n_users)))   # (D, n_users_pad)
    itab = jnp.pad(item_emb.astype(table_dtype).T,
                   ((0, 0), (0, n_items_pad - n_items)))   # (D, n_items_pad)

    iota = jnp.arange(_CHUNK, dtype=jnp.int32).reshape(_CHUNK, 1)
    w_row = jnp.asarray(w_out, jnp.float32).reshape(1, emb_dim)
    bias = jnp.asarray(b_out, jnp.float32).reshape(-1)[:1]  # (1,) -> SMEM

    # VMEM accounting: tables count ONCE (Buffered(1)); id/out tiles are
    # double-buffered; the one-hot scratch is bounded by the chunk size.
    itemsize = jnp.dtype(table_dtype).itemsize
    vmem_bytes = (
        (n_users_pad + n_items_pad) * emb_dim * itemsize   # resident tables x1
        + _CHUNK * 128 * 4                                 # iota column (lane padded)
        + 2 * 2 * tile_b * 4                               # uid/iid, double buffered
        + 2 * tile_b * 4                                   # output, double buffered
        + 2 * _CHUNK * tile_b * itemsize                   # per-chunk one-hots
        + 3 * emb_dim * tile_b * 4                         # u, v accumulators + u*v
    )
    assert vmem_bytes <= 40 * 1024 * 1024, (
        "embedding tables / one-hot scratch too large for VMEM residency")
    # TODO(synk): for production-size catalogs keep the tables at
    #             memory_space=pl.ANY and DMA-gather rows per tile (or, for
    #             tiny catalogs, precompute the full score matrix) instead of
    #             the VMEM-resident one-hot gather.

    grid = (b_pad // tile_b,)
    resident = dict(pipeline_mode=pl.Buffered(1))  # grid-invariant: no dbl-buf
    out = pl.pallas_call(
        _gmf_forward_kernel,
        out_shape=jax.ShapeDtypeStruct((1, b_pad), jnp.float32),
        grid_spec=pltpu.PrefetchScalarGridSpec(
            num_scalar_prefetch=0,
            grid=grid,
            in_specs=[
                pl.BlockSpec((1, tile_b), lambda i: (0, i)),            # user ids
                pl.BlockSpec((1, tile_b), lambda i: (0, i)),            # item ids
                pl.BlockSpec((_CHUNK, 1), lambda i: (0, 0)),            # iota col
                pl.BlockSpec((emb_dim, n_users_pad), lambda i: (0, 0),
                             **resident),                               # user table
                pl.BlockSpec((emb_dim, n_items_pad), lambda i: (0, 0),
                             **resident),                               # item table
                pl.BlockSpec((1, emb_dim), lambda i: (0, 0)),           # W row
                pl.BlockSpec(memory_space=pltpu.MemorySpace.SMEM),      # bias
            ],
            out_specs=pl.BlockSpec((1, tile_b), lambda i: (0, i)),
        ),
        compiler_params=pltpu.CompilerParams(
            # Batch tiles are independent -> shard across both v7x TensorCores.
            dimension_semantics=("parallel",),
            # Explicit VMEM budget; under v7x's 64 MiB physical.
            vmem_limit_bytes=48 * 1024 * 1024,
        ),
    )(uid, iid, iota, utab, itab, w_row, bias)
    return out[0, :batch].reshape(batch, 1)


# Pure-JAX reference for validation (same bf16 table rounding as the kernel;
# the one-hot selection in the kernel is exact, so only table rounding and
# matmul precision differ).
def gmf_forward_ref(user_input, item_input, user_emb, item_emb, w_out, b_out,
                    table_dtype=jnp.bfloat16):
    u = jnp.take(user_emb.astype(table_dtype).astype(jnp.float32),
                 user_input, axis=0)
    v = jnp.take(item_emb.astype(table_dtype).astype(jnp.float32),
                 item_input, axis=0)
    w = jnp.asarray(w_out, jnp.float32).reshape(-1, 1)
    b = jnp.asarray(b_out, jnp.float32).reshape(-1)[0]
    return jax.nn.sigmoid((u * v) @ w + b)


if __name__ == "__main__":
    key = jax.random.PRNGKey(0)
    k_ue, k_ie, k_w, k_u, k_i = jax.random.split(key, 5)

    n_users, n_items, emb_dim = 64, 256, 32
    batch = 1024          # e.g. 512 positives * (1 + 1 negative) per fit() batch

    # Deterministic synthetic parameters (module __init__ defines no weights;
    # these are the standard GMF parameter shapes).
    user_emb = jax.random.normal(k_ue, (n_users, emb_dim), jnp.float32) * 0.1
    item_emb = jax.random.normal(k_ie, (n_items, emb_dim), jnp.float32) * 0.1
    w_out = jax.random.normal(k_w, (emb_dim, 1), jnp.float32) * 0.1
    b_out = jnp.zeros((1, 1), jnp.float32)

    # Deterministic synthetic batch of (user, item) index pairs.
    user_input = jax.random.randint(k_u, (batch,), 0, n_users, jnp.int32)
    item_input = jax.random.randint(k_i, (batch,), 0, n_items, jnp.int32)

    out = gmf_forward(user_input, item_input, user_emb, item_emb, w_out, b_out)
    out = jax.block_until_ready(out)
    ref = gmf_forward_ref(user_input, item_input, user_emb, item_emb,
                          w_out, b_out)
    assert out.shape == (batch, 1)
    assert jnp.allclose(out, ref, atol=1e-5, rtol=1e-5), (
        float(jnp.max(jnp.abs(out - ref))))

    # Also exercise a batch that is not a multiple of tile_b (padding path,
    # single grid step).
    out_tail = gmf_forward(user_input[:100], item_input[:100],
                           user_emb, item_emb, w_out, b_out)
    out_tail = jax.block_until_ready(out_tail)
    ref_tail = gmf_forward_ref(user_input[:100], item_input[:100],
                               user_emb, item_emb, w_out, b_out)
    assert out_tail.shape == (100, 1)
    assert jnp.allclose(out_tail, ref_tail, atol=1e-5, rtol=1e-5)

    print("KERNEL_OK")
</pallas_src>

<mosaic_0001>
module attributes {stable_mosaic.version = 11 : i64} {
  func.func @_gmf_forward_kernel(%arg0: i32, %arg1: memref<1x512xi32, #tpu.memory_space<vmem>>, %arg2: memref<1x512xi32, #tpu.memory_space<vmem>>, %arg3: memref<256x1xi32, #tpu.memory_space<vmem>>, %arg4: memref<32x256xbf16, #tpu.memory_space<vmem>>, %arg5: memref<32x256xbf16, #tpu.memory_space<vmem>>, %arg6: memref<1x32xf32, #tpu.memory_space<vmem>>, %arg7: memref<1xf32, #tpu.memory_space<smem>>, %arg8: memref<1x512xf32, #tpu.memory_space<vmem>>) attributes {dimension_semantics = [#tpu.dimension_semantics<parallel>], iteration_bounds = array<i64: 2>, scalar_prefetch = 0 : i64, scratch_operands = 0 : i64, tpu.core_type = #tpu.core_type<tc>, window_params = [{transform_indices = @transform_0, window_bounds = array<i64: 1, 512>}, {transform_indices = @transform_1, window_bounds = array<i64: 1, 512>}, {pipeline_mode = #tpu.pipeline_mode<synchronous>, transform_indices = @transform_2, window_bounds = array<i64: 256, 1>}, {pipeline_mode = #tpu.pipeline_mode<synchronous>, transform_indices = @transform_3, window_bounds = array<i64: 32, 256>}, {pipeline_mode = #tpu.pipeline_mode<synchronous>, transform_indices = @transform_4, window_bounds = array<i64: 32, 256>}, {pipeline_mode = #tpu.pipeline_mode<synchronous>, transform_indices = @transform_5, window_bounds = array<i64: 1, 32>}, {transform_indices = @transform_6, window_bounds = array<i64: 1>}, {transform_indices = @transform_7, window_bounds = array<i64: 1, 512>}]} {
    %c0 = arith.constant 0 : index
    %c0_0 = arith.constant 0 : index
    %0 = vector.load %arg3[%c0, %c0_0] : memref<256x1xi32, #tpu.memory_space<vmem>>, vector<256x1xi32>
    %c0_1 = arith.constant 0 : index
    %c0_2 = arith.constant 0 : index
    %1 = vector.load %arg1[%c0_1, %c0_2] : memref<1x512xi32, #tpu.memory_space<vmem>>, vector<1x512xi32>
    %c0_3 = arith.constant 0 : index
    %c0_4 = arith.constant 0 : index
    %2 = vector.load %arg2[%c0_3, %c0_4] : memref<1x512xi32, #tpu.memory_space<vmem>>, vector<1x512xi32>
    %cst = arith.constant 0.000000e+00 : f32
    %3 = vector.broadcast %cst : f32 to vector<32x512xf32>
    %c0_i32 = arith.constant 0 : i32
    %4 = vector.broadcast %c0_i32 : i32 to vector<1x512xi32>
    %5 = arith.subi %1, %4 : vector<1x512xi32>
    %6 = vector.broadcast %0 : vector<256x1xi32> to vector<256x512xi32>
    %7 = vector.broadcast %5 : vector<1x512xi32> to vector<256x512xi32>
    %8 = arith.cmpi eq, %6, %7 : vector<256x512xi32>
    %9 = arith.extui %8 : vector<256x512xi1> to vector<256x512xi32>
    %10 = arith.sitofp %9 : vector<256x512xi32> to vector<256x512xf32>
    %11 = arith.truncf %10 : vector<256x512xf32> to vector<256x512xbf16>
    %c0_5 = arith.constant 0 : index
    %c0_6 = arith.constant 0 : index
    %12 = vector.load %arg4[%c0_5, %c0_6] : memref<32x256xbf16, #tpu.memory_space<vmem>>, vector<32x256xbf16>
    %cst_7 = arith.constant dense<0.000000e+00> : vector<32x512xf32>
    %13 = tpu.matmul %12, %11, %cst_7 {dimension_numbers = #tpu.dot_dimension_numbers<[1], [0], [0], [1], [0, 0, 1, 1], [], []>} : vector<32x256xbf16>, vector<256x512xbf16>, vector<32x512xf32> -> vector<32x512xf32>
    %14 = arith.addf %3, %13 : vector<32x512xf32>
    %cst_8 = arith.constant 0.000000e+00 : f32
    %15 = vector.broadcast %cst_8 : f32 to vector<32x512xf32>
    %c0_i32_9 = arith.constant 0 : i32
    %16 = vector.broadcast %c0_i32_9 : i32 to vector<1x512xi32>
    %17 = arith.subi %2, %16 : vector<1x512xi32>
    %18 = vector.broadcast %0 : vector<256x1xi32> to vector<256x512xi32>
    %19 = vector.broadcast %17 : vector<1x512xi32> to vector<256x512xi32>
    %20 = arith.cmpi eq, %18, %19 : vector<256x512xi32>
    %21 = arith.extui %20 : vector<256x512xi1> to vector<256x512xi32>
    %22 = arith.sitofp %21 : vector<256x512xi32> to vector<256x512xf32>
    %23 = arith.truncf %22 : vector<256x512xf32> to vector<256x512xbf16>
    %c0_10 = arith.constant 0 : index
    %c0_11 = arith.constant 0 : index
    %24 = vector.load %arg5[%c0_10, %c0_11] : memref<32x256xbf16, #tpu.memory_space<vmem>>, vector<32x256xbf16>
    %cst_12 = arith.constant dense<0.000000e+00> : vector<32x512xf32>
    %25 = tpu.matmul %24, %23, %cst_12 {dimension_numbers = #tpu.dot_dimension_numbers<[1], [0], [0], [1], [0, 0, 1, 1], [], []>} : vector<32x256xbf16>, vector<256x512xbf16>, vector<32x512xf32> -> vector<32x512xf32>
    %26 = arith.addf %15, %25 : vector<32x512xf32>
    %c0_13 = arith.constant 0 : index
    %c0_14 = arith.constant 0 : index
    %27 = vector.load %arg6[%c0_13, %c0_14] : memref<1x32xf32, #tpu.memory_space<vmem>>, vector<1x32xf32>
    %28 = arith.mulf %14, %26 : vector<32x512xf32>
    %cst_15 = arith.constant dense<0.000000e+00> : vector<1x512xf32>
    %29 = tpu.matmul %27, %28, %cst_15 {dimension_numbers = #tpu.dot_dimension_numbers<[1], [0], [0], [1], [0, 0, 1, 1], [], []>} : vector<1x32xf32>, vector<32x512xf32>, vector<1x512xf32> -> vector<1x512xf32>
    %c0_16 = arith.constant 0 : index
    %30 = memref.load %arg7[%c0_16] : memref<1xf32, #tpu.memory_space<smem>>
    %31 = vector.broadcast %30 : f32 to vector<1x512xf32>
    %32 = arith.addf %29, %31 : vector<1x512xf32>
    %33 = arith.negf %32 : vector<1x512xf32>
    %34 = math.exp %33 : vector<1x512xf32>
    %cst_17 = arith.constant 1.000000e+00 : f32
    %35 = vector.broadcast %cst_17 : f32 to vector<1x512xf32>
    %36 = arith.addf %35, %34 : vector<1x512xf32>
    %37 = arith.divf %35, %36 : vector<1x512xf32>
    %c0_18 = arith.constant 0 : index
    %c0_19 = arith.constant 0 : index
    %38 = vector.load %arg8[%c0_18, %c0_19] : memref<1x512xf32, #tpu.memory_space<vmem>>, vector<1x512xf32>
    tpu.vector_store %arg8[%c0_18, %c0_19], %37 {strides = array<i32>} : memref<1x512xf32, #tpu.memory_space<vmem>>, vector<1x512xf32>,
    return
  }
  func.func @transform_0(%arg0: i32) -> (i32, i32) {
    %c0_i32 = arith.constant 0 : i32
    %c0_i32_0 = arith.constant 0 : i32
    return %c0_i32, %arg0 : i32, i32
  }
  func.func @transform_1(%arg0: i32) -> (i32, i32) {
    %c0_i32 = arith.constant 0 : i32
    %c0_i32_0 = arith.constant 0 : i32
    return %c0_i32, %arg0 : i32, i32
  }
  func.func @transform_2(%arg0: i32) -> (i32, i32) {
    %c0_i32 = arith.constant 0 : i32
    %c0_i32_0 = arith.constant 0 : i32
    %c0_i32_1 = arith.constant 0 : i32
    return %c0_i32, %c0_i32_0 : i32, i32
  }
  func.func @transform_3(%arg0: i32) -> (i32, i32) {
    %c0_i32 = arith.constant 0 : i32
    %c0_i32_0 = arith.constant 0 : i32
    %c0_i32_1 = arith.constant 0 : i32
    return %c0_i32, %c0_i32_0 : i32, i32
  }
  func.func @transform_4(%arg0: i32) -> (i32, i32) {
    %c0_i32 = arith.constant 0 : i32
    %c0_i32_0 = arith.constant 0 : i32
    %c0_i32_1 = arith.constant 0 : i32
    return %c0_i32, %c0_i32_0 : i32, i32
  }
  func.func @transform_5(%arg0: i32) -> (i32, i32) {
    %c0_i32 = arith.constant 0 : i32
    %c0_i32_0 = arith.constant 0 : i32
    %c0_i32_1 = arith.constant 0 : i32
    return %c0_i32, %c0_i32_0 : i32, i32
  }
  func.func @transform_6(%arg0: i32) -> i32 {
    %c0_i32 = arith.constant 0 : i32
    %c0_i32_0 = arith.constant 0 : i32
    return %c0_i32 : i32
  }
  func.func @transform_7(%arg0: i32) -> (i32, i32) {
    %c0_i32 = arith.constant 0 : i32
    %c0_i32_0 = arith.constant 0 : i32
    return %c0_i32, %arg0 : i32, i32
  }
}

</mosaic_0001>

<llo_original>
// kernel: tpu_custom_call.1
$region0: #{tpu_custom_call.1}
  #allocation0 [shape = 'u32[]', space=smem, size = 0x4, offset = 0x4, fixed_abs, tag = 'smem constant byte address 0x4 - core index']
  #allocation1 [shape = 'u32[72,128]{1,0:T(1,128)}', space=vmem, size = 0x9000, scoped, tag = 'internal scratch']
  #allocation2 [shape = 'f32[1]{0:T(128)S(6)}', space=smem, size = 0x200, scoped, tag = 'scoped memory for tpu_custom_call.1']
  %s0 = inlined_call_operand.vmem [shape: s32[1,1024], index: 0, kind: input, shape index: {}]
  %s1 = inlined_call_operand.vmem [shape: s32[1,1024], index: 1, kind: input, shape index: {}]
  %s2 = inlined_call_operand.vmem [shape: s32[256,1], index: 2, kind: input, shape index: {}]
  %s3 = inlined_call_operand.vmem [shape: bf16[32,256], index: 3, kind: input, shape index: {}]
  %s4 = inlined_call_operand.vmem [shape: bf16[32,256], index: 4, kind: input, shape index: {}]
  %s5 = inlined_call_operand.vmem [shape: f32[1,32], index: 5, kind: input, shape index: {}]
  %s6 = inlined_call_operand.<no memory space> [shape: f32[1], index: 6, kind: input, shape index: {}]
  %s7 = inlined_call_operand.hbm [shape: f32[1,1024], index: 7, kind: output, shape index: {}]
  %s8 = sld [smem:[#allocation0]]
  $region61: #{tpu_custom_call.1} parent=0
    _
  %s10 = ssub.s32 1, %s8
  %s11 = scalar_select 0, %s10, %s8
  %12 = sst [smem:[#allocation2]] %s6
  $region1: #{tpu_custom_call.1} parent=0
    #allocation3 [shape = 'u8[4096]{0}', space=vmem, size = 0x1000, scoped, tag = 'output window, operand 0']
    #allocation4 [shape = 's32[2]{0}', space=sflag, size = 0x8, scoped, tag = 'scoped memory for tpu_custom_call.1']
    %13 = vsyncpa [#allocation4], 0
    %s14 = scalar_lea.sflag [#allocation4], 1
    %15 = vsyncpa %s14, 0
    loop: start=0, step=1, limit=4
    $region2: #{tpu_custom_call.1} parent=1 // loop_pre_header
      _
    $region3: #{tpu_custom_call.1} parent=1 // loop_header
      %s17 = sphi 0, %s21
      %p18 = scmp.ge.s32.totalorder %s17, 4
      %s27 = sphi 0, %s29
      %s30 = sphi 0, %s27
      %s31 = sphi 0, %s30
      %s47 = sphi 0, %s31
      %s53 = sphi 0, %s55
      %s56 = sphi 0, %s53
      %s57 = sphi 0, %s56
      %s73 = sphi 0, %s57
      %s77 = sphi 0, %s77
      %s79 = sphi 0, %s77
      %s80 = sphi 0, %s79
      %s94 = sphi 0, %s80
      %s98 = sphi 0, %s98
      %s100 = sphi 0, %s98
      %s101 = sphi 0, %s100
      %s115 = sphi 0, %s101
      %s119 = sphi 0, %s119
      %s121 = sphi 0, %s119
      %s122 = sphi 0, %s121
      %s136 = sphi 0, %s122
      %s140 = sphi 0, %s140
      %s142 = sphi 0, %s140
      %s143 = sphi 0, %s142
      %s157 = sphi 0, %s143
      %s161 = sphi 0, %s161
      %s163 = sphi 0, %s161
      %s164 = sphi 0, %s163
      %s178 = sphi 0, %s164
      %s184 = sphi 0, %s186
      %s187 = sphi 0, %s184
      %s188 = sphi 0, %s187
      %s204 = sphi 0, %s188
    $region4: #{tpu_custom_call.1} parent=1 // loop_header_branch
      %20 = sbr.rel (%p18) target = $region8
    $region5: #{tpu_custom_call.1} parent=1 // loop_body
      %s22 = ssub.s32 %s17, 1
      %s23 = ssub.s32 %s17, 2
      %s24 = sadd.s32 %s17, 1
      %s25 = ssub.s32 %s17, %s24
      %p26 = scmp.eq.s32.totalorder %s25, 0
      %s28 = sadd.s32 %s27, 1
      %s29 = scalar_select %p26, %s27, %s28
      %p32 = pneg %p26
      %p33 = scmp.eq.s32.totalorder %s17, 1
      %p34 = por %p32, %p33
      %p35 = scmp.ne.s32.totalorder %s27, %s30
      %p36 = scmp.eq.s32.totalorder %s17, 0
      %p37 = por %p35, %p36
      %p38 = scmp.ne.s32.totalorder %s27, %s30
      %p39 = scmp.eq.s32.totalorder %s22, 1
      %p40 = por %p38, %p39
      %p41 = scmp.ne.s32.totalorder %s30, %s31
      %p42 = scmp.eq.s32.totalorder %s22, 0
      %p43 = por %p41, %p42
      %p44 = scmp.ne.s32.totalorder %s30, %s31
      %p45 = scmp.eq.s32.totalorder %s23, 1
      %p46 = por %p44, %p45
      %p48 = scmp.ne.s32.totalorder %s31, %s47
      %p49 = scmp.eq.s32.totalorder %s23, 0
      %p50 = por %p48, %p49
      %s51 = ssub.s32 %s17, %s24
      %p52 = scmp.eq.s32.totalorder %s51, 0
      %s54 = sadd.s32 %s53, 1
      %s55 = scalar_select %p52, %s53, %s54
      %p58 = pneg %p52
      %p59 = scmp.eq.s32.totalorder %s17, 1
      %p60 = por %p58, %p59
      %p61 = scmp.ne.s32.totalorder %s53, %s56
      %p62 = scmp.eq.s32.totalorder %s17, 0
      %p63 = por %p61, %p62
      %p64 = scmp.ne.s32.totalorder %s53, %s56
      %p65 = scmp.eq.s32.totalorder %s22, 1
      %p66 = por %p64, %p65
      %p67 = scmp.ne.s32.totalorder %s56, %s57
      %p68 = scmp.eq.s32.totalorder %s22, 0
      %p69 = por %p67, %p68
      %p70 = scmp.ne.s32.totalorder %s56, %s57
      %p71 = scmp.eq.s32.totalorder %s23, 1
      %p72 = por %p70, %p71
      %p74 = scmp.ne.s32.totalorder %s57, %s73
      %p75 = scmp.eq.s32.totalorder %s23, 0
      %p76 = por %p74, %p75
      %s78 = sadd.s32 %s77, 1
      %p81 = scmp.eq.s32.totalorder %s17, 1
      %p82 = scmp.ne.s32.totalorder %s77, %s79
      %p83 = scmp.eq.s32.totalorder %s17, 0
      %p84 = por %p82, %p83
      %p85 = scmp.ne.s32.totalorder %s77, %s79
      %p86 = scmp.eq.s32.totalorder %s22, 1
      %p87 = por %p85, %p86
      %p88 = scmp.ne.s32.totalorder %s79, %s80
      %p89 = scmp.eq.s32.totalorder %s22, 0
      %p90 = por %p88, %p89
      %p91 = scmp.ne.s32.totalorder %s79, %s80
      %p92 = scmp.eq.s32.totalorder %s23, 1
      %p93 = por %p91, %p92
      %p95 = scmp.ne.s32.totalorder %s80, %s94
      %p96 = scmp.eq.s32.totalorder %s23, 0
      %p97 = por %p95, %p96
      %s99 = sadd.s32 %s98, 1
      %p102 = scmp.eq.s32.totalorder %s17, 1
      %p103 = scmp.ne.s32.totalorder %s98, %s100
      %p104 = scmp.eq.s32.totalorder %s17, 0
      %p105 = por %p103, %p104
      %p106 = scmp.ne.s32.totalorder %s98, %s100
      %p107 = scmp.eq.s32.totalorder %s22, 1
      %p108 = por %p106, %p107
      %p109 = scmp.ne.s32.totalorder %s100, %s101
      %p110 = scmp.eq.s32.totalorder %s22, 0
      %p111 = por %p109, %p110
      %p112 = scmp.ne.s32.totalorder %s100, %s101
      %p113 = scmp.eq.s32.totalorder %s23, 1
      %p114 = por %p112, %p113
      %p116 = scmp.ne.s32.totalorder %s101, %s115
      %p117 = scmp.eq.s32.totalorder %s23, 0
      %p118 = por %p116, %p117
      %s120 = sadd.s32 %s119, 1
      %p123 = scmp.eq.s32.totalorder %s17, 1
      %p124 = scmp.ne.s32.totalorder %s119, %s121
      %p125 = scmp.eq.s32.totalorder %s17, 0
      %p126 = por %p124, %p125
      %p127 = scmp.ne.s32.totalorder %s119, %s121
      %p128 = scmp.eq.s32.totalorder %s22, 1
      %p129 = por %p127, %p128
      %p130 = scmp.ne.s32.totalorder %s121, %s122
      %p131 = scmp.eq.s32.totalorder %s22, 0
      %p132 = por %p130, %p131
      %p133 = scmp.ne.s32.totalorder %s121, %s122
      %p134 = scmp.eq.s32.totalorder %s23, 1
      %p135 = por %p133, %p134
      %p137 = scmp.ne.s32.totalorder %s122, %s136
      %p138 = scmp.eq.s32.totalorder %s23, 0
      %p139 = por %p137, %p138
      %s141 = sadd.s32 %s140, 1
      %p144 = scmp.eq.s32.totalorder %s17, 1
      %p145 = scmp.ne.s32.totalorder %s140, %s142
      %p146 = scmp.eq.s32.totalorder %s17, 0
      %p147 = por %p145, %p146
      %p148 = scmp.ne.s32.totalorder %s140, %s142
      %p149 = scmp.eq.s32.totalorder %s22, 1
      %p150 = por %p148, %p149
      %p151 = scmp.ne.s32.totalorder %s142, %s143
      %p152 = scmp.eq.s32.totalorder %s22, 0
      %p153 = por %p151, %p152
      %p154 = scmp.ne.s32.totalorder %s142, %s143
      %p155 = scmp.eq.s32.totalorder %s23, 1
      %p156 = por %p154, %p155
      %p158 = scmp.ne.s32.totalorder %s143, %s157
      %p159 = scmp.eq.s32.totalorder %s23, 0
      %p160 = por %p158, %p159
      %s162 = sadd.s32 %s161, 1
      %p165 = scmp.eq.s32.totalorder %s17, 1
      %p166 = scmp.ne.s32.totalorder %s161, %s163
      %p167 = scmp.eq.s32.totalorder %s17, 0
      %p168 = por %p166, %p167
      %p169 = scmp.ne.s32.totalorder %s161, %s163
      %p170 = scmp.eq.s32.totalorder %s22, 1
      %p171 = por %p169, %p170
      %p172 = scmp.ne.s32.totalorder %s163, %s164
      %p173 = scmp.eq.s32.totalorder %s22, 0
      %p174 = por %p172, %p173
      %p175 = scmp.ne.s32.totalorder %s163, %s164
      %p176 = scmp.eq.s32.totalorder %s23, 1
      %p177 = por %p175, %p176
      %p179 = scmp.ne.s32.totalorder %s164, %s178
      %p180 = scmp.eq.s32.totalorder %s23, 0
      %p181 = por %p179, %p180
      %s182 = ssub.s32 %s17, %s24
      %p183 = scmp.eq.s32.totalorder %s182, 0
      %s185 = sadd.s32 %s184, 1
      %s186 = scalar_select %p183, %s184, %s185
      %p189 = pneg %p183
      %p190 = scmp.eq.s32.totalorder %s17, 1
      %p191 = por %p189, %p190
      %p192 = scmp.ne.s32.totalorder %s184, %s187
      %p193 = scmp.eq.s32.totalorder %s17, 0
      %p194 = por %p192, %p193
      %p195 = scmp.ne.s32.totalorder %s184, %s187
      %p196 = scmp.eq.s32.totalorder %s22, 1
      %p197 = por %p195, %p196
      %p198 = scmp.ne.s32.totalorder %s187, %s188
      %p199 = scmp.eq.s32.totalorder %s22, 0
      %p200 = por %p198, %p199
      %p201 = scmp.ne.s32.totalorder %s187, %s188
      %p202 = scmp.eq.s32.totalorder %s23, 1
      %p203 = por %p201, %p202
      %p205 = scmp.ne.s32.totalorder %s188, %s204
      %p206 = scmp.eq.s32.totalorder %s23, 0
      %p207 = por %p205, %p206
      %p208 = scmp.le.s32.totalorder 1, %s17
      %p209 = scmp.lt.s32.totalorder %s17, 3
      %p210 = pnand %p208, %p209
      %p211 = pneg %p210
      // Predicated region
      $region9: #{tpu_custom_call.1} parent=5 // pred_check
        _
      $region10: #{tpu_custom_call.1} parent=5 // pred_check_branch
        %213 = sbr.rel (%p210) target = $region12
      $region11: #{tpu_custom_call.1} parent=5 // pred_region
        %s214 = ssub.s32 %s17, 1
        // Predicated region
        $region13: #{tpu_custom_call.1} parent=11 // pred_check
          %p215 = pneg %p90
        $region14: #{tpu_custom_call.1} parent=11 // pred_check_branch
          %217 = sbr.rel (%p215) target = $region16
        $region15: #{tpu_custom_call.1} parent=11 // pred_region
          _
        $region16: #{tpu_custom_call.1} parent=11 // pred_fallthru
          _
        // Predicated region
        $region17: #{tpu_custom_call.1} parent=11 // pred_check
          %p218 = pneg %p111
        $region18: #{tpu_custom_call.1} parent=11 // pred_check_branch
          %220 = sbr.rel (%p218) target = $region20
        $region19: #{tpu_custom_call.1} parent=11 // pred_region
          _
        $region20: #{tpu_custom_call.1} parent=11 // pred_fallthru
          _
        // Predicated region
        $region21: #{tpu_custom_call.1} parent=11 // pred_check
          %p221 = pneg %p132
        $region22: #{tpu_custom_call.1} parent=11 // pred_check_branch
          %223 = sbr.rel (%p221) target = $region24
        $region23: #{tpu_custom_call.1} parent=11 // pred_region
          _
        $region24: #{tpu_custom_call.1} parent=11 // pred_fallthru
          _
        // Predicated region
        $region25: #{tpu_custom_call.1} parent=11 // pred_check
          %p224 = pneg %p153
        $region26: #{tpu_custom_call.1} parent=11 // pred_check_branch
          %226 = sbr.rel (%p224) target = $region28
        $region27: #{tpu_custom_call.1} parent=11 // pred_region
          _
        $region28: #{tpu_custom_call.1} parent=11 // pred_fallthru
          _
        // Predicated region
        $region29: #{tpu_custom_call.1} parent=11 // pred_check
          %p227 = pneg %p174
        $region30: #{tpu_custom_call.1} parent=11 // pred_check_branch
          %229 = sbr.rel (%p227) target = $region32
        $region31: #{tpu_custom_call.1} parent=11 // pred_region
          _
        $region32: #{tpu_custom_call.1} parent=11 // pred_fallthru
          _
      $region12: #{tpu_custom_call.1} parent=5 // pred_fallthru
        _
      %p230 = scmp.lt.s32.totalorder %s17, 2
      // Predicated region
      $region33: #{tpu_custom_call.1} parent=5 // pred_check
        %p231 = pneg %p230
      $region34: #{tpu_custom_call.1} parent=5 // pred_check_branch
        %233 = sbr.rel (%p231) target = $region36
      $region35: #{tpu_custom_call.1} parent=5 // pred_region
        // Predicated region
        $region37: #{tpu_custom_call.1} parent=35 // pred_check
          %p234 = pneg %p37
        $region38: #{tpu_custom_call.1} parent=35 // pred_check_branch
          %236 = sbr.rel (%p234) target = $region40
        $region39: #{tpu_custom_call.1} parent=35 // pred_region
          %s237 = smul.u32 4, %s17
          %p238 = scmp.lt.s32.totalorder %s237, 7
          %s239 = scalar_select %p238, %s237, 7
          %s240 = scalar_lea.vmem %s0, %s239
          %s241 = smul.u32 4, %s17
        $region40: #{tpu_custom_call.1} parent=35 // pred_fallthru
          _
        // Predicated region
        $region41: #{tpu_custom_call.1} parent=35 // pred_check
          %p242 = pneg %p63
        $region42: #{tpu_custom_call.1} parent=35 // pred_check_branch
          %244 = sbr.rel (%p242) target = $region44
        $region43: #{tpu_custom_call.1} parent=35 // pred_region
          %s245 = smul.u32 4, %s17
          %p246 = scmp.lt.s32.totalorder %s245, 7
          %s247 = scalar_select %p246, %s245, 7
          %s248 = scalar_lea.vmem %s1, %s247
          %s249 = smul.u32 4, %s17
        $region44: #{tpu_custom_call.1} parent=35 // pred_fallthru
          _
      $region36: #{tpu_custom_call.1} parent=5 // pred_fallthru
        _
      %p250 = scmp.le.s32.totalorder 1, %s17
      %p251 = scmp.lt.s32.totalorder %s17, 3
      %p252 = pnand %p250, %p251
      %p253 = pneg %p252
      // Predicated region
      $region45: #{tpu_custom_call.1} parent=5 // pred_check
        _
      $region46: #{tpu_custom_call.1} parent=5 // pred_check_branch
        %255 = sbr.rel (%p252) target = $region48
      $region47: #{tpu_custom_call.1} parent=5 // pred_region
        %s256 = ssub.s32 %s17, 1
        %s257 = smul.u32 4, %s22
        %p258 = scmp.lt.s32.totalorder %s257, 7
        %s259 = scalar_select %p258, %s257, 7
        %s260 = scalar_lea.vmem %s0, %s259
        %p261 = pneg %p43
        %p262 = pneg %p40
        %s263 = smul.u32 4, %s22
        %p264 = scmp.lt.s32.totalorder %s263, 7
        %s265 = scalar_select %p264, %s263, 7
        %s266 = scalar_lea.vmem %s1, %s265
        %p267 = pneg %p69
        %p268 = pneg %p66
        %p269 = pneg %p90
        %p270 = pneg %p87
        %p271 = pneg %p111
        %p272 = pneg %p108
        %p273 = pneg %p132
        %p274 = pneg %p129
        %p275 = pneg %p153
        %p276 = pneg %p150
        %p277 = pneg %p174
        %p278 = pneg %p171
        %p279 = pneg %p200
        %p280 = pneg %p197
        %s281 = sand.u32 %s187, 1
        %s282 = scalar_lea.sflag [#allocation4], %s281
        %s283 = sand.u32 %s187, 1
        %s284 = smul.addr %s283, 4
        %s285 = scalar_lea.vmem [#allocation3], %s284
        %s286 = smul.u32 4, %s22
        %p287 = scmp.lt.s32.totalorder %s286, 7
        %s288 = scalar_select %p287, %s286, 7
        %s289 = scalar_lea.vmem %s0, %s288
        %s290 = smul.u32 4, %s22
        %s291 = smul.u32 4, %s22
        %p292 = scmp.lt.s32.totalorder %s291, 7
        %s293 = scalar_select %p292, %s291, 7
        %s294 = scalar_lea.vmem %s1, %s293
        %s295 = smul.u32 4, %s22
        %s296 = smul.u32 4, %s22
        %v297 = vld [vmem:[%s2] sm:$0xff]
        %v298 = vld [vmem:[%s2 + $0x8] sm:$0xff]
        %v299 = vld [vmem:[%s2 + $0x10] sm:$0xff]
        %v300 = vld [vmem:[%s2 + $0x18] sm:$0xff]
        %v301 = vld [vmem:[%s2 + $0x20] sm:$0xff]
        %v302 = vld [vmem:[%s2 + $0x28] sm:$0xff]
        %v303 = vld [vmem:[%s2 + $0x30] sm:$0xff]
        %v304 = vld [vmem:[%s2 + $0x38] sm:$0xff]
        %v305 = vld [vmem:[%s2 + $0x40] sm:$0xff]
        %v306 = vld [vmem:[%s2 + $0x48] sm:$0xff]
        %v307 = vld [vmem:[%s2 + $0x50] sm:$0xff]
        %v308 = vld [vmem:[%s2 + $0x58] sm:$0xff]
        %v309 = vld [vmem:[%s2 + $0x60] sm:$0xff]
        %v310 = vld [vmem:[%s2 + $0x68] sm:$0xff]
        %v311 = vld [vmem:[%s2 + $0x70] sm:$0xff]
        %v312 = vld [vmem:[%s2 + $0x78] sm:$0xff]
        %v313 = vld [vmem:[%s2 + $0x80] sm:$0xff]
        %v314 = vld [vmem:[%s2 + $0x88] sm:$0xff]
        %v315 = vld [vmem:[%s2 + $0x90] sm:$0xff]
        %v316 = vld [vmem:[%s2 + $0x98] sm:$0xff]
        %v317 = vld [vmem:[%s2 + $0xa0] sm:$0xff]
        %v318 = vld [vmem:[%s2 + $0xa8] sm:$0xff]
        %v319 = vld [vmem:[%s2 + $0xb0] sm:$0xff]
        %v320 = vld [vmem:[%s2 + $0xb8] sm:$0xff]
        %v321 = vld [vmem:[%s2 + $0xc0] sm:$0xff]
        %v322 = vld [vmem:[%s2 + $0xc8] sm:$0xff]
        %v323 = vld [vmem:[%s2 + $0xd0] sm:$0xff]
        %v324 = vld [vmem:[%s2 + $0xd8] sm:$0xff]
        %v325 = vld [vmem:[%s2 + $0xe0] sm:$0xff]
        %v326 = vld [vmem:[%s2 + $0xe8] sm:$0xff]
        %v327 = vld [vmem:[%s2 + $0xf0] sm:$0xff]
        %v328 = vld [vmem:[%s2 + $0xf8] sm:$0xff]
        %v329 = vld [vmem:[%s289] sm:$0xf]
        %v330 = vld [vmem:[%s294] sm:$0xf]
        %331 = vset.pattern.permute.xlu0 0
        %332 = vperm.xlu0 %331, %v297
        %v333 = vpop.permute.xlu0 %332
        %334 = vset.pattern.permute.xlu0 0
        %335 = vperm.xlu0 %334, %v298
        %v336 = vpop.permute.xlu0 %335
        %337 = vset.pattern.permute.xlu0 0
        %338 = vperm.xlu0 %337, %v299
        %v339 = vpop.permute.xlu0 %338
        %340 = vset.pattern.permute.xlu0 0
        %341 = vperm.xlu0 %340, %v300
        %v342 = vpop.permute.xlu0 %341
        %343 = vset.pattern.permute.xlu0 0
        %344 = vperm.xlu0 %343, %v301
        %v345 = vpop.permute.xlu0 %344
        %346 = vset.pattern.permute.xlu0 0
        %347 = vperm.xlu0 %346, %v302
        %v348 = vpop.permute.xlu0 %347
        %349 = vset.pattern.permute.xlu0 0
        %350 = vperm.xlu0 %349, %v303
        %v351 = vpop.permute.xlu0 %350
        %352 = vset.pattern.permute.xlu0 0
        %353 = vperm.xlu0 %352, %v304
        %v354 = vpop.permute.xlu0 %353
        %355 = vset.pattern.permute.xlu0 0
        %356 = vperm.xlu0 %355, %v305
        %v357 = vpop.permute.xlu0 %356
        %358 = vset.pattern.permute.xlu0 0
        %359 = vperm.xlu0 %358, %v306
        %v360 = vpop.permute.xlu0 %359
        %361 = vset.pattern.permute.xlu0 0
        %362 = vperm.xlu0 %361, %v307
        %v363 = vpop.permute.xlu0 %362
        %364 = vset.pattern.permute.xlu0 0
        %365 = vperm.xlu0 %364, %v308
        %v366 = vpop.permute.xlu0 %365
        %367 = vset.pattern.permute.xlu0 0
        %368 = vperm.xlu0 %367, %v309
        %v369 = vpop.permute.xlu0 %368
        %370 = vset.pattern.permute.xlu0 0
        %371 = vperm.xlu0 %370, %v310
        %v372 = vpop.permute.xlu0 %371
        %373 = vset.pattern.permute.xlu0 0
        %374 = vperm.xlu0 %373, %v311
        %v375 = vpop.permute.xlu0 %374
        %376 = vset.pattern.permute.xlu0 0
        %377 = vperm.xlu0 %376, %v312
        %v378 = vpop.permute.xlu0 %377
        %379 = vset.pattern.permute.xlu0 0
        %380 = vperm.xlu0 %379, %v313
        %v381 = vpop.permute.xlu0 %380
        %382 = vset.pattern.permute.xlu0 0
        %383 = vperm.xlu0 %382, %v314
        %v384 = vpop.permute.xlu0 %383
        %385 = vset.pattern.permute.xlu0 0
        %386 = vperm.xlu0 %385, %v315
        %v387 = vpop.permute.xlu0 %386
        %388 = vset.pattern.permute.xlu0 0
        %389 = vperm.xlu0 %388, %v316
        %v390 = vpop.permute.xlu0 %389
        %391 = vset.pattern.permute.xlu0 0
        %392 = vperm.xlu0 %391, %v317
        %v393 = vpop.permute.xlu0 %392
        %394 = vset.pattern.permute.xlu0 0
        %395 = vperm.xlu0 %394, %v318
        %v396 = vpop.permute.xlu0 %395
        %397 = vset.pattern.permute.xlu0 0
        %398 = vperm.xlu0 %397, %v319
        %v399 = vpop.permute.xlu0 %398
        %400 = vset.pattern.permute.xlu0 0
        %401 = vperm.xlu0 %400, %v320
        %v402 = vpop.permute.xlu0 %401
        %403 = vset.pattern.permute.xlu0 0
        %404 = vperm.xlu0 %403, %v321
        %v405 = vpop.permute.xlu0 %404
        %406 = vset.pattern.permute.xlu0 0
        %407 = vperm.xlu0 %406, %v322
        %v408 = vpop.permute.xlu0 %407
        %409 = vset.pattern.permute.xlu0 0
        %410 = vperm.xlu0 %409, %v323
        %v411 = vpop.permute.xlu0 %410
        %412 = vset.pattern.permute.xlu0 0
        %413 = vperm.xlu0 %412, %v324
        %v414 = vpop.permute.xlu0 %413
        %415 = vset.pattern.permute.xlu0 0
        %416 = vperm.xlu0 %415, %v325
        %v417 = vpop.permute.xlu0 %416
        %418 = vset.pattern.permute.xlu0 0
        %419 = vperm.xlu0 %418, %v326
        %v420 = vpop.permute.xlu0 %419
        %421 = vset.pattern.permute.xlu0 0
        %422 = vperm.xlu0 %421, %v327
        %v423 = vpop.permute.xlu0 %422
        %424 = vset.pattern.permute.xlu0 0
        %425 = vperm.xlu0 %424, %v328
        %v426 = vpop.permute.xlu0 %425
        %v427 = vperm.slane %v329, 0
        %v428 = vperm.slane %v329, 1
        %v429 = vperm.slane %v329, 2
        %v430 = vperm.slane %v329, 3
        %vm431 = vcmp.eq.s32.totalorder %v333, %v427
        %vm432 = vcmp.eq.s32.totalorder %v333, %v428
        %vm433 = vcmp.eq.s32.totalorder %v333, %v429
        %vm434 = vcmp.eq.s32.totalorder %v333, %v430
        %vm435 = vcmp.eq.s32.totalorder %v336, %v427
        %vm436 = vcmp.eq.s32.totalorder %v336, %v428
        %vm437 = vcmp.eq.s32.totalorder %v336, %v429
        %vm438 = vcmp.eq.s32.totalorder %v336, %v430
        %vm439 = vcmp.eq.s32.totalorder %v339, %v427
        %vm440 = vcmp.eq.s32.totalorder %v339, %v428
        %vm441 = vcmp.eq.s32.totalorder %v339, %v429
        %vm442 = vcmp.eq.s32.totalorder %v339, %v430
        %vm443 = vcmp.eq.s32.totalorder %v342, %v427
        %vm444 = vcmp.eq.s32.totalorder %v342, %v428
        %vm445 = vcmp.eq.s32.totalorder %v342, %v429
        %vm446 = vcmp.eq.s32.totalorder %v342, %v430
        %vm447 = vcmp.eq.s32.totalorder %v345, %v427
        %vm448 = vcmp.eq.s32.totalorder %v345, %v428
        %vm449 = vcmp.eq.s32.totalorder %v345, %v429
        %vm450 = vcmp.eq.s32.totalorder %v345, %v430
        %vm451 = vcmp.eq.s32.totalorder %v348, %v427
        %vm452 = vcmp.eq.s32.totalorder %v348, %v428
        %vm453 = vcmp.eq.s32.totalorder %v348, %v429
        %vm454 = vcmp.eq.s32.totalorder %v348, %v430
        %vm455 = vcmp.eq.s32.totalorder %v351, %v427
        %vm456 = vcmp.eq.s32.totalorder %v351, %v428
        %vm457 = vcmp.eq.s32.totalorder %v351, %v429
        %vm458 = vcmp.eq.s32.totalorder %v351, %v430
        %vm459 = vcmp.eq.s32.totalorder %v354, %v427
        %vm460 = vcmp.eq.s32.totalorder %v354, %v428
        %vm461 = vcmp.eq.s32.totalorder %v354, %v429
        %vm462 = vcmp.eq.s32.totalorder %v354, %v430
        %vm463 = vcmp.eq.s32.totalorder %v357, %v427
        %vm464 = vcmp.eq.s32.totalorder %v357, %v428
        %vm465 = vcmp.eq.s32.totalorder %v357, %v429
        %vm466 = vcmp.eq.s32.totalorder %v357, %v430
        %vm467 = vcmp.eq.s32.totalorder %v360, %v427
        %vm468 = vcmp.eq.s32.totalorder %v360, %v428
        %vm469 = vcmp.eq.s32.totalorder %v360, %v429
        %vm470 = vcmp.eq.s32.totalorder %v360, %v430
        %vm471 = vcmp.eq.s32.totalorder %v363, %v427
        %vm472 = vcmp.eq.s32.totalorder %v363, %v428
        %vm473 = vcmp.eq.s32.totalorder %v363, %v429
        %vm474 = vcmp.eq.s32.totalorder %v363, %v430
        %vm475 = vcmp.eq.s32.totalorder %v366, %v427
        %vm476 = vcmp.eq.s32.totalorder %v366, %v428
        %vm477 = vcmp.eq.s32.totalorder %v366, %v429
        %vm478 = vcmp.eq.s32.totalorder %v366, %v430
        %vm479 = vcmp.eq.s32.totalorder %v369, %v427
        %vm480 = vcmp.eq.s32.totalorder %v369, %v428
        %vm481 = vcmp.eq.s32.totalorder %v369, %v429
        %vm482 = vcmp.eq.s32.totalorder %v369, %v430
        %vm483 = vcmp.eq.s32.totalorder %v372, %v427
        %vm484 = vcmp.eq.s32.totalorder %v372, %v428
        %vm485 = vcmp.eq.s32.totalorder %v372, %v429
        %vm486 = vcmp.eq.s32.totalorder %v372, %v430
        %vm487 = vcmp.eq.s32.totalorder %v375, %v427
        %vm488 = vcmp.eq.s32.totalorder %v375, %v428
        %vm489 = vcmp.eq.s32.totalorder %v375, %v429
        %vm490 = vcmp.eq.s32.totalorder %v375, %v430
        %vm491 = vcmp.eq.s32.totalorder %v378, %v427
        %vm492 = vcmp.eq.s32.totalorder %v378, %v428
        %vm493 = vcmp.eq.s32.totalorder %v378, %v429
        %vm494 = vcmp.eq.s32.totalorder %v378, %v430
        %vm495 = vcmp.eq.s32.totalorder %v381, %v427
        %vm496 = vcmp.eq.s32.totalorder %v381, %v428
        %vm497 = vcmp.eq.s32.totalorder %v381, %v429
        %vm498 = vcmp.eq.s32.totalorder %v381, %v430
        %vm499 = vcmp.eq.s32.totalorder %v384, %v427
        %vm500 = vcmp.eq.s32.totalorder %v384, %v428
        %vm501 = vcmp.eq.s32.totalorder %v384, %v429
        %vm502 = vcmp.eq.s32.totalorder %v384, %v430
        %vm503 = vcmp.eq.s32.totalorder %v387, %v427
        %vm504 = vcmp.eq.s32.totalorder %v387, %v428
        %vm505 = vcmp.eq.s32.totalorder %v387, %v429
        %vm506 = vcmp.eq.s32.totalorder %v387, %v430
        %vm507 = vcmp.eq.s32.totalorder %v390, %v427
        %vm508 = vcmp.eq.s32.totalorder %v390, %v428
        %vm509 = vcmp.eq.s32.totalorder %v390, %v429
        %vm510 = vcmp.eq.s32.totalorder %v390, %v430
        %vm511 = vcmp.eq.s32.totalorder %v393, %v427
        %vm512 = vcmp.eq.s32.totalorder %v393, %v428
        %vm513 = vcmp.eq.s32.totalorder %v393, %v429
        %vm514 = vcmp.eq.s32.totalorder %v393, %v430
        %vm515 = vcmp.eq.s32.totalorder %v396, %v427
        %vm516 = vcmp.eq.s32.totalorder %v396, %v428
        %vm517 = vcmp.eq.s32.totalorder %v396, %v429
        %vm518 = vcmp.eq.s32.totalorder %v396, %v430
        %vm519 = vcmp.eq.s32.totalorder %v399, %v427
        %vm520 = vcmp.eq.s32.totalorder %v399, %v428
        %vm521 = vcmp.eq.s32.totalorder %v399, %v429
        %vm522 = vcmp.eq.s32.totalorder %v399, %v430
        %vm523 = vcmp.eq.s32.totalorder %v402, %v427
        %vm524 = vcmp.eq.s32.totalorder %v402, %v428
        %vm525 = vcmp.eq.s32.totalorder %v402, %v429
        %vm526 = vcmp.eq.s32.totalorder %v402, %v430
        %vm527 = vcmp.eq.s32.totalorder %v405, %v427
        %vm528 = vcmp.eq.s32.totalorder %v405, %v428
        %vm529 = vcmp.eq.s32.totalorder %v405, %v429
        %vm530 = vcmp.eq.s32.totalorder %v405, %v430
        %vm531 = vcmp.eq.s32.totalorder %v408, %v427
        %vm532 = vcmp.eq.s32.totalorder %v408, %v428
        %vm533 = vcmp.eq.s32.totalorder %v408, %v429
        %vm534 = vcmp.eq.s32.totalorder %v408, %v430
        %vm535 = vcmp.eq.s32.totalorder %v411, %v427
        %vm536 = vcmp.eq.s32.totalorder %v411, %v428
        %vm537 = vcmp.eq.s32.totalorder %v411, %v429
        %vm538 = vcmp.eq.s32.totalorder %v411, %v430
        %vm539 = vcmp.eq.s32.totalorder %v414, %v427
        %vm540 = vcmp.eq.s32.totalorder %v414, %v428
        %vm541 = vcmp.eq.s32.totalorder %v414, %v429
        %vm542 = vcmp.eq.s32.totalorder %v414, %v430
        %vm543 = vcmp.eq.s32.totalorder %v417, %v427
        %vm544 = vcmp.eq.s32.totalorder %v417, %v428
        %vm545 = vcmp.eq.s32.totalorder %v417, %v429
        %vm546 = vcmp.eq.s32.totalorder %v417, %v430
        %vm547 = vcmp.eq.s32.totalorder %v420, %v427
        %vm548 = vcmp.eq.s32.totalorder %v420, %v428
        %vm549 = vcmp.eq.s32.totalorder %v420, %v429
        %vm550 = vcmp.eq.s32.totalorder %v420, %v430
        %vm551 = vcmp.eq.s32.totalorder %v423, %v427
        %vm552 = vcmp.eq.s32.totalorder %v423, %v428
        %vm553 = vcmp.eq.s32.totalorder %v423, %v429
        %vm554 = vcmp.eq.s32.totalorder %v423, %v430
        %vm555 = vcmp.eq.s32.totalorder %v426, %v427
        %vm556 = vcmp.eq.s32.totalorder %v426, %v428
        %vm557 = vcmp.eq.s32.totalorder %v426, %v429
        %vm558 = vcmp.eq.s32.totalorder %v426, %v430
        %v559 = vsel %vm431, 1, 0
        %v560 = vsel %vm432, 1, 0
        %v561 = vsel %vm433, 1, 0
        %v562 = vsel %vm434, 1, 0
        %v563 = vsel %vm435, 1, 0
        %v564 = vsel %vm436, 1, 0
        %v565 = vsel %vm437, 1, 0
        %v566 = vsel %vm438, 1, 0
        %v567 = vsel %vm439, 1, 0
        %v568 = vsel %vm440, 1, 0
        %v569 = vsel %vm441, 1, 0
        %v570 = vsel %vm442, 1, 0
        %v571 = vsel %vm443, 1, 0
        %v572 = vsel %vm444, 1, 0
        %v573 = vsel %vm445, 1, 0
        %v574 = vsel %vm446, 1, 0
        %v575 = vsel %vm447, 1, 0
        %v576 = vsel %vm448, 1, 0
        %v577 = vsel %vm449, 1, 0
        %v578 = vsel %vm450, 1, 0
        %v579 = vsel %vm451, 1, 0
        %v580 = vsel %vm452, 1, 0
        %v581 = vsel %vm453, 1, 0
        %v582 = vsel %vm454, 1, 0
        %v583 = vsel %vm455, 1, 0
        %v584 = vsel %vm456, 1, 0
        %v585 = vsel %vm457, 1, 0
        %v586 = vsel %vm458, 1, 0
        %v587 = vsel %vm459, 1, 0
        %v588 = vsel %vm460, 1, 0
        %v589 = vsel %vm461, 1, 0
        %v590 = vsel %vm462, 1, 0
        %v591 = vsel %vm463, 1, 0
        %v592 = vsel %vm464, 1, 0
        %v593 = vsel %vm465, 1, 0
        %v594 = vsel %vm466, 1, 0
        %v595 = vsel %vm467, 1, 0
        %v596 = vsel %vm468, 1, 0
        %v597 = vsel %vm469, 1, 0
        %v598 = vsel %vm470, 1, 0
        %v599 = vsel %vm471, 1, 0
        %v600 = vsel %vm472, 1, 0
        %v601 = vsel %vm473, 1, 0
        %v602 = vsel %vm474, 1, 0
        %v603 = vsel %vm475, 1, 0
        %v604 = vsel %vm476, 1, 0
        %v605 = vsel %vm477, 1, 0
        %v606 = vsel %vm478, 1, 0
        %v607 = vsel %vm479, 1, 0
        %v608 = vsel %vm480, 1, 0
        %v609 = vsel %vm481, 1, 0
        %v610 = vsel %vm482, 1, 0
        %v611 = vsel %vm483, 1, 0
        %v612 = vsel %vm484, 1, 0
        %v613 = vsel %vm485, 1, 0
        %v614 = vsel %vm486, 1, 0
        %v615 = vsel %vm487, 1, 0
        %v616 = vsel %vm488, 1, 0
        %v617 = vsel %vm489, 1, 0
        %v618 = vsel %vm490, 1, 0
        %v619 = vsel %vm491, 1, 0
        %v620 = vsel %vm492, 1, 0
        %v621 = vsel %vm493, 1, 0
        %v622 = vsel %vm494, 1, 0
        %v623 = vsel %vm495, 1, 0
        %v624 = vsel %vm496, 1, 0
        %v625 = vsel %vm497, 1, 0
        %v626 = vsel %vm498, 1, 0
        %v627 = vsel %vm499, 1, 0
        %v628 = vsel %vm500, 1, 0
        %v629 = vsel %vm501, 1, 0
        %v630 = vsel %vm502, 1, 0
        %v631 = vsel %vm503, 1, 0
        %v632 = vsel %vm504, 1, 0
        %v633 = vsel %vm505, 1, 0
        %v634 = vsel %vm506, 1, 0
        %v635 = vsel %vm507, 1, 0
        %v636 = vsel %vm508, 1, 0
        %v637 = vsel %vm509, 1, 0
        %v638 = vsel %vm510, 1, 0
        %v639 = vsel %vm511, 1, 0
        %v640 = vsel %vm512, 1, 0
        %v641 = vsel %vm513, 1, 0
        %v642 = vsel %vm514, 1, 0
        %v643 = vsel %vm515, 1, 0
        %v644 = vsel %vm516, 1, 0
        %v645 = vsel %vm517, 1, 0
        %v646 = vsel %vm518, 1, 0
        %v647 = vsel %vm519, 1, 0
        %v648 = vsel %vm520, 1, 0
        %v649 = vsel %vm521, 1, 0
        %v650 = vsel %vm522, 1, 0
        %v651 = vsel %vm523, 1, 0
        %v652 = vsel %vm524, 1, 0
        %v653 = vsel %vm525, 1, 0
        %v654 = vsel %vm526, 1, 0
        %v655 = vsel %vm527, 1, 0
        %v656 = vsel %vm528, 1, 0
        %v657 = vsel %vm529, 1, 0
        %v658 = vsel %vm530, 1, 0
        %v659 = vsel %vm531, 1, 0
        %v660 = vsel %vm532, 1, 0
        %v661 = vsel %vm533, 1, 0
        %v662 = vsel %vm534, 1, 0
        %v663 = vsel %vm535, 1, 0
        %v664 = vsel %vm536, 1, 0
        %v665 = vsel %vm537, 1, 0
        %v666 = vsel %vm538, 1, 0
        %v667 = vsel %vm539, 1, 0
        %v668 = vsel %vm540, 1, 0
        %v669 = vsel %vm541, 1, 0
        %v670 = vsel %vm542, 1, 0
        %v671 = vsel %vm543, 1, 0
        %v672 = vsel %vm544, 1, 0
        %v673 = vsel %vm545, 1, 0
        %v674 = vsel %vm546, 1, 0
        %v675 = vsel %vm547, 1, 0
        %v676 = vsel %vm548, 1, 0
        %v677 = vsel %vm549, 1, 0
        %v678 = vsel %vm550, 1, 0
        %v679 = vsel %vm551, 1, 0
        %v680 = vsel %vm552, 1, 0
        %v681 = vsel %vm553, 1, 0
        %v682 = vsel %vm554, 1, 0
        %v683 = vsel %vm555, 1, 0
        %v684 = vsel %vm556, 1, 0
        %v685 = vsel %vm557, 1, 0
        %v686 = vsel %vm558, 1, 0
        %v687 = vcvt.s32.f32 %v559
        %v688 = vcvt.s32.f32 %v560
        %v689 = vcvt.s32.f32 %v561
        %v690 = vcvt.s32.f32 %v562
        %v691 = vcvt.s32.f32 %v563
        %v692 = vcvt.s32.f32 %v564
        %v693 = vcvt.s32.f32 %v565
        %v694 = vcvt.s32.f32 %v566
        %v695 = vcvt.s32.f32 %v567
        %v696 = vcvt.s32.f32 %v568
        %v697 = vcvt.s32.f32 %v569
        %v698 = vcvt.s32.f32 %v570
        %v699 = vcvt.s32.f32 %v571
        %v700 = vcvt.s32.f32 %v572
        %v701 = vcvt.s32.f32 %v573
        %v702 = vcvt.s32.f32 %v574
        %v703 = vcvt.s32.f32 %v575
        %v704 = vcvt.s32.f32 %v576
        %v705 = vcvt.s32.f32 %v577
        %v706 = vcvt.s32.f32 %v578
        %v707 = vcvt.s32.f32 %v579
        %v708 = vcvt.s32.f32 %v580
        %v709 = vcvt.s32.f32 %v581
        %v710 = vcvt.s32.f32 %v582
        %v711 = vcvt.s32.f32 %v583
        %v712 = vcvt.s32.f32 %v584
        %v713 = vcvt.s32.f32 %v585
        %v714 = vcvt.s32.f32 %v586
        %v715 = vcvt.s32.f32 %v587
        %v716 = vcvt.s32.f32 %v588
        %v717 = vcvt.s32.f32 %v589
        %v718 = vcvt.s32.f32 %v590
        %v719 = vcvt.s32.f32 %v591
        %v720 = vcvt.s32.f32 %v592
        %v721 = vcvt.s32.f32 %v593
        %v722 = vcvt.s32.f32 %v594
        %v723 = vcvt.s32.f32 %v595
        %v724 = vcvt.s32.f32 %v596
        %v725 = vcvt.s32.f32 %v597
        %v726 = vcvt.s32.f32 %v598
        %v727 = vcvt.s32.f32 %v599
        %v728 = vcvt.s32.f32 %v600
        %v729 = vcvt.s32.f32 %v601
        %v730 = vcvt.s32.f32 %v602
        %v731 = vcvt.s32.f32 %v603
        %v732 = vcvt.s32.f32 %v604
        %v733 = vcvt.s32.f32 %v605
        %v734 = vcvt.s32.f32 %v606
        %v735 = vcvt.s32.f32 %v607
        %v736 = vcvt.s32.f32 %v608
        %v737 = vcvt.s32.f32 %v609
        %v738 = vcvt.s32.f32 %v610
        %v739 = vcvt.s32.f32 %v611
        %v740 = vcvt.s32.f32 %v612
        %v741 = vcvt.s32.f32 %v613
        %v742 = vcvt.s32.f32 %v614
        %v743 = vcvt.s32.f32 %v615
        %v744 = vcvt.s32.f32 %v616
        %v745 = vcvt.s32.f32 %v617
        %v746 = vcvt.s32.f32 %v618
        %v747 = vcvt.s32.f32 %v619
        %v748 = vcvt.s32.f32 %v620
        %v749 = vcvt.s32.f32 %v621
        %v750 = vcvt.s32.f32 %v622
        %v751 = vcvt.s32.f32 %v623
        %v752 = vcvt.s32.f32 %v624
        %v753 = vcvt.s32.f32 %v625
        %v754 = vcvt.s32.f32 %v626
        %v755 = vcvt.s32.f32 %v627
        %v756 = vcvt.s32.f32 %v628
        %v757 = vcvt.s32.f32 %v629
        %v758 = vcvt.s32.f32 %v630
        %v759 = vcvt.s32.f32 %v631
        %v760 = vcvt.s32.f32 %v632
        %v761 = vcvt.s32.f32 %v633
        %v762 = vcvt.s32.f32 %v634
        %v763 = vcvt.s32.f32 %v635
        %v764 = vcvt.s32.f32 %v636
        %v765 = vcvt.s32.f32 %v637
        %v766 = vcvt.s32.f32 %v638
        %v767 = vcvt.s32.f32 %v639
        %v768 = vcvt.s32.f32 %v640
        %v769 = vcvt.s32.f32 %v641
        %v770 = vcvt.s32.f32 %v642
        %v771 = vcvt.s32.f32 %v643
        %v772 = vcvt.s32.f32 %v644
        %v773 = vcvt.s32.f32 %v645
        %v774 = vcvt.s32.f32 %v646
        %v775 = vcvt.s32.f32 %v647
        %v776 = vcvt.s32.f32 %v648
        %v777 = vcvt.s32.f32 %v649
        %v778 = vcvt.s32.f32 %v650
        %v779 = vcvt.s32.f32 %v651
        %v780 = vcvt.s32.f32 %v652
        %v781 = vcvt.s32.f32 %v653
        %v782 = vcvt.s32.f32 %v654
        %v783 = vcvt.s32.f32 %v655
        %v784 = vcvt.s32.f32 %v656
        %v785 = vcvt.s32.f32 %v657
        %v786 = vcvt.s32.f32 %v658
        %v787 = vcvt.s32.f32 %v659
        %v788 = vcvt.s32.f32 %v660
        %v789 = vcvt.s32.f32 %v661
        %v790 = vcvt.s32.f32 %v662
        %v791 = vcvt.s32.f32 %v663
        %v792 = vcvt.s32.f32 %v664
        %v793 = vcvt.s32.f32 %v665
        %v794 = vcvt.s32.f32 %v666
        %v795 = vcvt.s32.f32 %v667
        %v796 = vcvt.s32.f32 %v668
        %v797 = vcvt.s32.f32 %v669
        %v798 = vcvt.s32.f32 %v670
        %v799 = vcvt.s32.f32 %v671
        %v800 = vcvt.s32.f32 %v672
        %v801 = vcvt.s32.f32 %v673
        %v802 = vcvt.s32.f32 %v674
        %v803 = vcvt.s32.f32 %v675
        %v804 = vcvt.s32.f32 %v676
        %v805 = vcvt.s32.f32 %v677
        %v806 = vcvt.s32.f32 %v678
        %v807 = vcvt.s32.f32 %v679
        %v808 = vcvt.s32.f32 %v680
        %v809 = vcvt.s32.f32 %v681
        %v810 = vcvt.s32.f32 %v682
        %v811 = vcvt.s32.f32 %v683
        %v812 = vcvt.s32.f32 %v684
        %v813 = vcvt.s32.f32 %v685
        %v814 = vcvt.s32.f32 %v686
        %v815 = vpack.c.bf16 %v691, %v687
        %v816 = vpack.c.bf16 %v692, %v688
        %v817 = vpack.c.bf16 %v693, %v689
        %v818 = vpack.c.bf16 %v694, %v690
        %v819 = vpack.c.bf16 %v699, %v695
        %v820 = vpack.c.bf16 %v700, %v696
        %v821 = vpack.c.bf16 %v701, %v697
        %v822 = vpack.c.bf16 %v702, %v698
        %v823 = vpack.c.bf16 %v707, %v703
        %v824 = vpack.c.bf16 %v708, %v704
        %v825 = vpack.c.bf16 %v709, %v705
        %v826 = vpack.c.bf16 %v710, %v706
        %v827 = vpack.c.bf16 %v715, %v711
        %v828 = vpack.c.bf16 %v716, %v712
        %v829 = vpack.c.bf16 %v717, %v713
        %v830 = vpack.c.bf16 %v718, %v714
        %v831 = vpack.c.bf16 %v723, %v719
        %v832 = vpack.c.bf16 %v724, %v720
        %v833 = vpack.c.bf16 %v725, %v721
        %v834 = vpack.c.bf16 %v726, %v722
        %v835 = vpack.c.bf16 %v731, %v727
        %v836 = vpack.c.bf16 %v732, %v728
        %v837 = vpack.c.bf16 %v733, %v729
        %v838 = vpack.c.bf16 %v734, %v730
        %v839 = vpack.c.bf16 %v739, %v735
        %v840 = vpack.c.bf16 %v740, %v736
        %v841 = vpack.c.bf16 %v741, %v737
        %v842 = vpack.c.bf16 %v742, %v738
        %v843 = vpack.c.bf16 %v747, %v743
        %v844 = vpack.c.bf16 %v748, %v744
        %v845 = vpack.c.bf16 %v749, %v745
        %v846 = vpack.c.bf16 %v750, %v746
        %v847 = vpack.c.bf16 %v755, %v751
        %v848 = vpack.c.bf16 %v756, %v752
        %v849 = vpack.c.bf16 %v757, %v753
        %v850 = vpack.c.bf16 %v758, %v754
        %v851 = vpack.c.bf16 %v763, %v759
        %v852 = vpack.c.bf16 %v764, %v760
        %v853 = vpack.c.bf16 %v765, %v761
        %v854 = vpack.c.bf16 %v766, %v762
        %v855 = vpack.c.bf16 %v771, %v767
        %v856 = vpack.c.bf16 %v772, %v768
        %v857 = vpack.c.bf16 %v773, %v769
        %v858 = vpack.c.bf16 %v774, %v770
        %v859 = vpack.c.bf16 %v779, %v775
        %v860 = vpack.c.bf16 %v780, %v776
        %v861 = vpack.c.bf16 %v781, %v777
        %v862 = vpack.c.bf16 %v782, %v778
        %v863 = vpack.c.bf16 %v787, %v783
        %v864 = vpack.c.bf16 %v788, %v784
        %v865 = vpack.c.bf16 %v789, %v785
        %v866 = vpack.c.bf16 %v790, %v786
        %v867 = vpack.c.bf16 %v795, %v791
        %v868 = vpack.c.bf16 %v796, %v792
        %v869 = vpack.c.bf16 %v797, %v793
        %v870 = vpack.c.bf16 %v798, %v794
        %v871 = vpack.c.bf16 %v803, %v799
        %v872 = vpack.c.bf16 %v804, %v800
        %v873 = vpack.c.bf16 %v805, %v801
        %v874 = vpack.c.bf16 %v806, %v802
        %v875 = vpack.c.bf16 %v811, %v807
        %v876 = vpack.c.bf16 %v812, %v808
        %v877 = vpack.c.bf16 %v813, %v809
        %v878 = vpack.c.bf16 %v814, %v810
        %v879 = vld [vmem:[%s3] sm:$0xff]
        %v880 = vld [vmem:[%s3 + $0x8] sm:$0xff]
        %v881 = vld [vmem:[%s3 + $0x10] sm:$0xff]
        %v882 = vld [vmem:[%s3 + $0x18] sm:$0xff]
        %v887 = vunpack.c.l.b16 %v879
        %v888 = vunpack.c.h.b16 %v879
        %v889 = vunpack.c.l.b16 %v880
        %v890 = vunpack.c.h.b16 %v880
        %v891 = vunpack.c.l.b16 %v881
        %v892 = vunpack.c.h.b16 %v881
        %v893 = vunpack.c.l.b16 %v882
        %v894 = vunpack.c.h.b16 %v882
        %v895 = vpack.c.b16 %v889, %v887
        %v896 = vpack.c.b16 %v890, %v888
        %v897 = vpack.c.b16 %v893, %v891
        %v898 = vpack.c.b16 %v894, %v892
        %903 = vmatpush.bf16.msra.mxu0 %v843
        %904 = vmatpush.bf16.msra.mxu0 %v839
        %905 = vmatpush.bf16.msra.mxu0 %v835
        %906 = vmatpush.bf16.msra.mxu0 %v831
        %907 = vmatpush.bf16.msra.mxu0 %v827
        %908 = vmatpush.bf16.msra.mxu0 %v823
        %909 = vmatpush.bf16.msra.mxu0 %v819
        %910 = vmatpush.bf16.msra.mxu0 %v815
        %911 = vmatmul.bf16.gmra.mxu0 %v895
        %v912 = vpop.f32.mrf.mxu0
        %v913 = vadd.f32 0.0, %v912
        %v914 = vpop.f32.mrf.mxu0
        %v915 = vadd.f32 0.0, %v914
        %916 = vmatmul.bf16.gmra.mxu0 %v897
        %v917 = vpop.f32.mrf.mxu0
        %v918 = vadd.f32 0.0, %v917
        %v919 = vpop.f32.mrf.mxu0
        %v920 = vadd.f32 0.0, %v919
        %921 = vdwg.mxu0
        %922 = vmatpush.bf16.msra.mxu0 %v875
        %923 = vmatpush.bf16.msra.mxu0 %v871
        %924 = vmatpush.bf16.msra.mxu0 %v867
        %925 = vmatpush.bf16.msra.mxu0 %v863
        %926 = vmatpush.bf16.msra.mxu0 %v859
        %927 = vmatpush.bf16.msra.mxu0 %v855
        %928 = vmatpush.bf16.msra.mxu0 %v851
        %929 = vmatpush.bf16.msra.mxu0 %v847
        %930 = vmatmul.bf16.gmra.mxu0 %v896
        %v931 = vpop.f32.mrf.mxu0
        %v932 = vadd.f32 %v913, %v931
        %v933 = vpop.f32.mrf.mxu0
        %v934 = vadd.f32 %v915, %v933
        %935 = vmatmul.bf16.gmra.mxu0 %v898
        %v936 = vpop.f32.mrf.mxu0
        %v937 = vadd.f32 %v918, %v936
        %v938 = vpop.f32.mrf.mxu0
        %v939 = vadd.f32 %v920, %v938
        %940 = vdwg.mxu0
        %941 = vmatpush.bf16.msra.mxu0 %v844
        %942 = vmatpush.bf16.msra.mxu0 %v840
        %943 = vmatpush.bf16.msra.mxu0 %v836
        %944 = vmatpush.bf16.msra.mxu0 %v832
        %945 = vmatpush.bf16.msra.mxu0 %v828
        %946 = vmatpush.bf16.msra.mxu0 %v824
        %947 = vmatpush.bf16.msra.mxu0 %v820
        %948 = vmatpush.bf16.msra.mxu0 %v816
        %949 = vmatmul.bf16.gmra.mxu0 %v895
        %v950 = vpop.f32.mrf.mxu0
        %v951 = vadd.f32 0.0, %v950
        %v952 = vpop.f32.mrf.mxu0
        %v953 = vadd.f32 0.0, %v952
        %954 = vmatmul.bf16.gmra.mxu0 %v897
        %v955 = vpop.f32.mrf.mxu0
        %v956 = vadd.f32 0.0, %v955
        %v957 = vpop.f32.mrf.mxu0
        %v958 = vadd.f32 0.0, %v957
        %959 = vdwg.mxu0
        %960 = vmatpush.bf16.msra.mxu0 %v876
        %961 = vmatpush.bf16.msra.mxu0 %v872
        %962 = vmatpush.bf16.msra.mxu0 %v868
        %963 = vmatpush.bf16.msra.mxu0 %v864
        %964 = vmatpush.bf16.msra.mxu0 %v860
        %965 = vmatpush.bf16.msra.mxu0 %v856
        %966 = vmatpush.bf16.msra.mxu0 %v852
        %967 = vmatpush.bf16.msra.mxu0 %v848
        %968 = vmatmul.bf16.gmra.mxu0 %v896
        %v969 = vpop.f32.mrf.mxu0
        %v970 = vadd.f32 %v951, %v969
        %v971 = vpop.f32.mrf.mxu0
        %v972 = vadd.f32 %v953, %v971
        %973 = vmatmul.bf16.gmra.mxu0 %v898
        %v974 = vpop.f32.mrf.mxu0
        %v975 = vadd.f32 %v956, %v974
        %v976 = vpop.f32.mrf.mxu0
        %v977 = vadd.f32 %v958, %v976
        %978 = vdwg.mxu0
        %979 = vmatpush.bf16.msra.mxu0 %v845
        %980 = vmatpush.bf16.msra.mxu0 %v841
        %981 = vmatpush.bf16.msra.mxu0 %v837
        %982 = vmatpush.bf16.msra.mxu0 %v833
        %983 = vmatpush.bf16.msra.mxu0 %v829
        %984 = vmatpush.bf16.msra.mxu0 %v825
        %985 = vmatpush.bf16.msra.mxu0 %v821
        %986 = vmatpush.bf16.msra.mxu0 %v817
        %987 = vmatmul.bf16.gmra.mxu0 %v895
        %v988 = vpop.f32.mrf.mxu0
        %v989 = vadd.f32 0.0, %v988
        %v990 = vpop.f32.mrf.mxu0
        %v991 = vadd.f32 0.0, %v990
        %992 = vmatmul.bf16.gmra.mxu0 %v897
        %v993 = vpop.f32.mrf.mxu0
        %v994 = vadd.f32 0.0, %v993
        %v995 = vpop.f32.mrf.mxu0
        %v996 = vadd.f32 0.0, %v995
        %997 = vdwg.mxu0
        %998 = vmatpush.bf16.msra.mxu0 %v877
        %999 = vmatpush.bf16.msra.mxu0 %v873
        %1000 = vmatpush.bf16.msra.mxu0 %v869
        %1001 = vmatpush.bf16.msra.mxu0 %v865
        %1002 = vmatpush.bf16.msra.mxu0 %v861
        %1003 = vmatpush.bf16.msra.mxu0 %v857
        %1004 = vmatpush.bf16.msra.mxu0 %v853
        %1005 = vmatpush.bf16.msra.mxu0 %v849
        %1006 = vmatmul.bf16.gmra.mxu0 %v896
        %v1007 = vpop.f32.mrf.mxu0
        %v1008 = vadd.f32 %v989, %v1007
        %v1009 = vpop.f32.mrf.mxu0
        %v1010 = vadd.f32 %v991, %v1009
        %1011 = vmatmul.bf16.gmra.mxu0 %v898
        %v1012 = vpop.f32.mrf.mxu0
        %v1013 = vadd.f32 %v994, %v1012
        %v1014 = vpop.f32.mrf.mxu0
        %v1015 = vadd.f32 %v996, %v1014
        %1016 = vdwg.mxu0
        %1017 = vmatpush.bf16.msra.mxu0 %v846
        %1018 = vmatpush.bf16.msra.mxu0 %v842
        %1019 = vmatpush.bf16.msra.mxu0 %v838
        %1020 = vmatpush.bf16.msra.mxu0 %v834
        %1021 = vmatpush.bf16.msra.mxu0 %v830
        %1022 = vmatpush.bf16.msra.mxu0 %v826
        %1023 = vmatpush.bf16.msra.mxu0 %v822
        %1024 = vmatpush.bf16.msra.mxu0 %v818
        %1025 = vmatmul.bf16.gmra.mxu0 %v895
        %v1026 = vpop.f32.mrf.mxu0
        %v1027 = vadd.f32 0.0, %v1026
        %v1028 = vpop.f32.mrf.mxu0
        %v1029 = vadd.f32 0.0, %v1028
        %1030 = vmatmul.bf16.gmra.mxu0 %v897
        %v1031 = vpop.f32.mrf.mxu0
        %v1032 = vadd.f32 0.0, %v1031
        %v1033 = vpop.f32.mrf.mxu0
        %v1034 = vadd.f32 0.0, %v1033
        %1035 = vdwg.mxu0
        %1036 = vmatpush.bf16.msra.mxu0 %v878
        %1037 = vmatpush.bf16.msra.mxu0 %v874
        %1038 = vmatpush.bf16.msra.mxu0 %v870
        %1039 = vmatpush.bf16.msra.mxu0 %v866
        %1040 = vmatpush.bf16.msra.mxu0 %v862
        %1041 = vmatpush.bf16.msra.mxu0 %v858
        %1042 = vmatpush.bf16.msra.mxu0 %v854
        %1043 = vmatpush.bf16.msra.mxu0 %v850
        %1044 = vmatmul.bf16.gmra.mxu0 %v896
        %v1045 = vpop.f32.mrf.mxu0
        %v1046 = vadd.f32 %v1027, %v1045
        %v1047 = vpop.f32.mrf.mxu0
        %v1048 = vadd.f32 %v1029, %v1047
        %1049 = vmatmul.bf16.gmra.mxu0 %v898
        %v1050 = vpop.f32.mrf.mxu0
        %v1051 = vadd.f32 %v1032, %v1050
        %v1052 = vpop.f32.mrf.mxu0
        %v1053 = vadd.f32 %v1034, %v1052
        %1054 = vdwg.mxu0
        %v1055 = vperm.slane %v330, 0
        %v1056 = vperm.slane %v330, 1
        %v1057 = vperm.slane %v330, 2
        %v1058 = vperm.slane %v330, 3
        %vm1059 = vcmp.eq.s32.totalorder %v333, %v1055
        %vm1060 = vcmp.eq.s32.totalorder %v333, %v1056
        %vm1061 = vcmp.eq.s32.totalorder %v333, %v1057
        %vm1062 = vcmp.eq.s32.totalorder %v333, %v1058
        %vm1063 = vcmp.eq.s32.totalorder %v336, %v1055
        %vm1064 = vcmp.eq.s32.totalorder %v336, %v1056
        %vm1065 = vcmp.eq.s32.totalorder %v336, %v1057
        %vm1066 = vcmp.eq.s32.totalorder %v336, %v1058
        %vm1067 = vcmp.eq.s32.totalorder %v339, %v1055
        %vm1068 = vcmp.eq.s32.totalorder %v339, %v1056
        %vm1069 = vcmp.eq.s32.totalorder %v339, %v1057
        %vm1070 = vcmp.eq.s32.totalorder %v339, %v1058
        %vm1071 = vcmp.eq.s32.totalorder %v342, %v1055
        %vm1072 = vcmp.eq.s32.totalorder %v342, %v1056
        %vm1073 = vcmp.eq.s32.totalorder %v342, %v1057
        %vm1074 = vcmp.eq.s32.totalorder %v342, %v1058
        %vm1075 = vcmp.eq.s32.totalorder %v345, %v1055
        %vm1076 = vcmp.eq.s32.totalorder %v345, %v1056
        %vm1077 = vcmp.eq.s32.totalorder %v345, %v1057
        %vm1078 = vcmp.eq.s32.totalorder %v345, %v1058
        %vm1079 = vcmp.eq.s32.totalorder %v348, %v1055
        %vm1080 = vcmp.eq.s32.totalorder %v348, %v1056
        %vm1081 = vcmp.eq.s32.totalorder %v348, %v1057
        %vm1082 = vcmp.eq.s32.totalorder %v348, %v1058
        %vm1083 = vcmp.eq.s32.totalorder %v351, %v1055
        %vm1084 = vcmp.eq.s32.totalorder %v351, %v1056
        %vm1085 = vcmp.eq.s32.totalorder %v351, %v1057
        %vm1086 = vcmp.eq.s32.totalorder %v351, %v1058
        %vm1087 = vcmp.eq.s32.totalorder %v354, %v1055
        %vm1088 = vcmp.eq.s32.totalorder %v354, %v1056
        %vm1089 = vcmp.eq.s32.totalorder %v354, %v1057
        %vm1090 = vcmp.eq.s32.totalorder %v354, %v1058
        %vm1091 = vcmp.eq.s32.totalorder %v357, %v1055
        %vm1092 = vcmp.eq.s32.totalorder %v357, %v1056
        %vm1093 = vcmp.eq.s32.totalorder %v357, %v1057
        %vm1094 = vcmp.eq.s32.totalorder %v357, %v1058
        %vm1095 = vcmp.eq.s32.totalorder %v360, %v1055
        %vm1096 = vcmp.eq.s32.totalorder %v360, %v1056
        %vm1097 = vcmp.eq.s32.totalorder %v360, %v1057
        %vm1098 = vcmp.eq.s32.totalorder %v360, %v1058
        %vm1099 = vcmp.eq.s32.totalorder %v363, %v1055
        %vm1100 = vcmp.eq.s32.totalorder %v363, %v1056
        %vm1101 = vcmp.eq.s32.totalorder %v363, %v1057
        %vm1102 = vcmp.eq.s32.totalorder %v363, %v1058
        %vm1103 = vcmp.eq.s32.totalorder %v366, %v1055
        %vm1104 = vcmp.eq.s32.totalorder %v366, %v1056
        %vm1105 = vcmp.eq.s32.totalorder %v366, %v1057
        %vm1106 = vcmp.eq.s32.totalorder %v366, %v1058
        %vm1107 = vcmp.eq.s32.totalorder %v369, %v1055
        %vm1108 = vcmp.eq.s32.totalorder %v369, %v1056
        %vm1109 = vcmp.eq.s32.totalorder %v369, %v1057
        %vm1110 = vcmp.eq.s32.totalorder %v369, %v1058
        %vm1111 = vcmp.eq.s32.totalorder %v372, %v1055
        %vm1112 = vcmp.eq.s32.totalorder %v372, %v1056
        %vm1113 = vcmp.eq.s32.totalorder %v372, %v1057
        %vm1114 = vcmp.eq.s32.totalorder %v372, %v1058
        %vm1115 = vcmp.eq.s32.totalorder %v375, %v1055
        %vm1116 = vcmp.eq.s32.totalorder %v375, %v1056
        %vm1117 = vcmp.eq.s32.totalorder %v375, %v1057
        %vm1118 = vcmp.eq.s32.totalorder %v375, %v1058
        %vm1119 = vcmp.eq.s32.totalorder %v378, %v1055
        %vm1120 = vcmp.eq.s32.totalorder %v378, %v1056
        %vm1121 = vcmp.eq.s32.totalorder %v378, %v1057
        %vm1122 = vcmp.eq.s32.totalorder %v378, %v1058
        %vm1123 = vcmp.eq.s32.totalorder %v381, %v1055
        %vm1124 = vcmp.eq.s32.totalorder %v381, %v1056
        %vm1125 = vcmp.eq.s32.totalorder %v381, %v1057
        %vm1126 = vcmp.eq.s32.totalorder %v381, %v1058
        %vm1127 = vcmp.eq.s32.totalorder %v384, %v1055
        %vm1128 = vcmp.eq.s32.totalorder %v384, %v1056
        %vm1129 = vcmp.eq.s32.totalorder %v384, %v1057
        %vm1130 = vcmp.eq.s32.totalorder %v384, %v1058
        %vm1131 = vcmp.eq.s32.totalorder %v387, %v1055
        %vm1132 = vcmp.eq.s32.totalorder %v387, %v1056
        %vm1133 = vcmp.eq.s32.totalorder %v387, %v1057
        %vm1134 = vcmp.eq.s32.totalorder %v387, %v1058
        %vm1135 = vcmp.eq.s32.totalorder %v390, %v1055
        %vm1136 = vcmp.eq.s32.totalorder %v390, %v1056
        %vm1137 = vcmp.eq.s32.totalorder %v390, %v1057
        %vm1138 = vcmp.eq.s32.totalorder %v390, %v1058
        %vm1139 = vcmp.eq.s32.totalorder %v393, %v1055
        %vm1140 = vcmp.eq.s32.totalorder %v393, %v1056
        %vm1141 = vcmp.eq.s32.totalorder %v393, %v1057
        %vm1142 = vcmp.eq.s32.totalorder %v393, %v1058
        %vm1143 = vcmp.eq.s32.totalorder %v396, %v1055
        %vm1144 = vcmp.eq.s32.totalorder %v396, %v1056
        %vm1145 = vcmp.eq.s32.totalorder %v396, %v1057
        %vm1146 = vcmp.eq.s32.totalorder %v396, %v1058
        %vm1147 = vcmp.eq.s32.totalorder %v399, %v1055
        %vm1148 = vcmp.eq.s32.totalorder %v399, %v1056
        %vm1149 = vcmp.eq.s32.totalorder %v399, %v1057
        %vm1150 = vcmp.eq.s32.totalorder %v399, %v1058
        %vm1151 = vcmp.eq.s32.totalorder %v402, %v1055
        %vm1152 = vcmp.eq.s32.totalorder %v402, %v1056
        %vm1153 = vcmp.eq.s32.totalorder %v402, %v1057
        %vm1154 = vcmp.eq.s32.totalorder %v402, %v1058
        %vm1155 = vcmp.eq.s32.totalorder %v405, %v1055
        %vm1156 = vcmp.eq.s32.totalorder %v405, %v1056
        %vm1157 = vcmp.eq.s32.totalorder %v405, %v1057
        %vm1158 = vcmp.eq.s32.totalorder %v405, %v1058
        %vm1159 = vcmp.eq.s32.totalorder %v408, %v1055
        %vm1160 = vcmp.eq.s32.totalorder %v408, %v1056
        %vm1161 = vcmp.eq.s32.totalorder %v408, %v1057
        %vm1162 = vcmp.eq.s32.totalorder %v408, %v1058
        %vm1163 = vcmp.eq.s32.totalorder %v411, %v1055
        %vm1164 = vcmp.eq.s32.totalorder %v411, %v1056
        %vm1165 = vcmp.eq.s32.totalorder %v411, %v1057
        %vm1166 = vcmp.eq.s32.totalorder %v411, %v1058
        %vm1167 = vcmp.eq.s32.totalorder %v414, %v1055
        %vm1168 = vcmp.eq.s32.totalorder %v414, %v1056
        %vm1169 = vcmp.eq.s32.totalorder %v414, %v1057
        %vm1170 = vcmp.eq.s32.totalorder %v414, %v1058
        %vm1171 = vcmp.eq.s32.totalorder %v417, %v1055
        %vm1172 = vcmp.eq.s32.totalorder %v417, %v1056
        %vm1173 = vcmp.eq.s32.totalorder %v417, %v1057
        %vm1174 = vcmp.eq.s32.totalorder %v417, %v1058
        %vm1175 = vcmp.eq.s32.totalorder %v420, %v1055
        %vm1176 = vcmp.eq.s32.totalorder %v420, %v1056
        %vm1177 = vcmp.eq.s32.totalorder %v420, %v1057
        %vm1178 = vcmp.eq.s32.totalorder %v420, %v1058
        %vm1179 = vcmp.eq.s32.totalorder %v423, %v1055
        %vm1180 = vcmp.eq.s32.totalorder %v423, %v1056
        %vm1181 = vcmp.eq.s32.totalorder %v423, %v1057
        %vm1182 = vcmp.eq.s32.totalorder %v423, %v1058
        %vm1183 = vcmp.eq.s32.totalorder %v426, %v1055
        %vm1184 = vcmp.eq.s32.totalorder %v426, %v1056
        %vm1185 = vcmp.eq.s32.totalorder %v426, %v1057
        %vm1186 = vcmp.eq.s32.totalorder %v426, %v1058
        %v1187 = vsel %vm1059, 1, 0
        %v1188 = vsel %vm1060, 1, 0
        %v1189 = vsel %vm1061, 1, 0
        %v1190 = vsel %vm1062, 1, 0
        %v1191 = vsel %vm1063, 1, 0
        %v1192 = vsel %vm1064, 1, 0
        %v1193 = vsel %vm1065, 1, 0
        %v1194 = vsel %vm1066, 1, 0
        %v1195 = vsel %vm1067, 1, 0
        %v1196 = vsel %vm1068, 1, 0
        %v1197 = vsel %vm1069, 1, 0
        %v1198 = vsel %vm1070, 1, 0
        %v1199 = vsel %vm1071, 1, 0
        %v1200 = vsel %vm1072, 1, 0
        %v1201 = vsel %vm1073, 1, 0
        %v1202 = vsel %vm1074, 1, 0
        %v1203 = vsel %vm1075, 1, 0
        %v1204 = vsel %vm1076, 1, 0
        %v1205 = vsel %vm1077, 1, 0
        %v1206 = vsel %vm1078, 1, 0
        %v1207 = vsel %vm1079, 1, 0
        %v1208 = vsel %vm1080, 1, 0
        %v1209 = vsel %vm1081, 1, 0
        %v1210 = vsel %vm1082, 1, 0
        %v1211 = vsel %vm1083, 1, 0
        %v1212 = vsel %vm1084, 1, 0
        %v1213 = vsel %vm1085, 1, 0
        %v1214 = vsel %vm1086, 1, 0
        %v1215 = vsel %vm1087, 1, 0
        %v1216 = vsel %vm1088, 1, 0
        %v1217 = vsel %vm1089, 1, 0
        %v1218 = vsel %vm1090, 1, 0
        %v1219 = vsel %vm1091, 1, 0
        %v1220 = vsel %vm1092, 1, 0
        %v1221 = vsel %vm1093, 1, 0
        %v1222 = vsel %vm1094, 1, 0
        %v1223 = vsel %vm1095, 1, 0
        %v1224 = vsel %vm1096, 1, 0
        %v1225 = vsel %vm1097, 1, 0
        %v1226 = vsel %vm1098, 1, 0
        %v1227 = vsel %vm1099, 1, 0
        %v1228 = vsel %vm1100, 1, 0
        %v1229 = vsel %vm1101, 1, 0
        %v1230 = vsel %vm1102, 1, 0
        %v1231 = vsel %vm1103, 1, 0
        %v1232 = vsel %vm1104, 1, 0
        %v1233 = vsel %vm1105, 1, 0
        %v1234 = vsel %vm1106, 1, 0
        %v1235 = vsel %vm1107, 1, 0
        %v1236 = vsel %vm1108, 1, 0
        %v1237 = vsel %vm1109, 1, 0
        %v1238 = vsel %vm1110, 1, 0
        %v1239 = vsel %vm1111, 1, 0
        %v1240 = vsel %vm1112, 1, 0
        %v1241 = vsel %vm1113, 1, 0
        %v1242 = vsel %vm1114, 1, 0
        %v1243 = vsel %vm1115, 1, 0
        %v1244 = vsel %vm1116, 1, 0
        %v1245 = vsel %vm1117, 1, 0
        %v1246 = vsel %vm1118, 1, 0
        %v1247 = vsel %vm1119, 1, 0
        %v1248 = vsel %vm1120, 1, 0
        %v1249 = vsel %vm1121, 1, 0
        %v1250 = vsel %vm1122, 1, 0
        %v1251 = vsel %vm1123, 1, 0
        %v1252 = vsel %vm1124, 1, 0
        %v1253 = vsel %vm1125, 1, 0
        %v1254 = vsel %vm1126, 1, 0
        %v1255 = vsel %vm1127, 1, 0
        %v1256 = vsel %vm1128, 1, 0
        %v1257 = vsel %vm1129, 1, 0
        %v1258 = vsel %vm1130, 1, 0
        %v1259 = vsel %vm1131, 1, 0
        %v1260 = vsel %vm1132, 1, 0
        %v1261 = vsel %vm1133, 1, 0
        %v1262 = vsel %vm1134, 1, 0
        %v1263 = vsel %vm1135, 1, 0
        %v1264 = vsel %vm1136, 1, 0
        %v1265 = vsel %vm1137, 1, 0
        %v1266 = vsel %vm1138, 1, 0
        %v1267 = vsel %vm1139, 1, 0
        %v1268 = vsel %vm1140, 1, 0
        %v1269 = vsel %vm1141, 1, 0
        %v1270 = vsel %vm1142, 1, 0
        %v1271 = vsel %vm1143, 1, 0
        %v1272 = vsel %vm1144, 1, 0
        %v1273 = vsel %vm1145, 1, 0
        %v1274 = vsel %vm1146, 1, 0
        %v1275 = vsel %vm1147, 1, 0
        %v1276 = vsel %vm1148, 1, 0
        %v1277 = vsel %vm1149, 1, 0
        %v1278 = vsel %vm1150, 1, 0
        %v1279 = vsel %vm1151, 1, 0
        %v1280 = vsel %vm1152, 1, 0
        %v1281 = vsel %vm1153, 1, 0
        %v1282 = vsel %vm1154, 1, 0
        %v1283 = vsel %vm1155, 1, 0
        %v1284 = vsel %vm1156, 1, 0
        %v1285 = vsel %vm1157, 1, 0
        %v1286 = vsel %vm1158, 1, 0
        %v1287 = vsel %vm1159, 1, 0
        %v1288 = vsel %vm1160, 1, 0
        %v1289 = vsel %vm1161, 1, 0
        %v1290 = vsel %vm1162, 1, 0
        %v1291 = vsel %vm1163, 1, 0
        %v1292 = vsel %vm1164, 1, 0
        %v1293 = vsel %vm1165, 1, 0
        %v1294 = vsel %vm1166, 1, 0
        %v1295 = vsel %vm1167, 1, 0
        %v1296 = vsel %vm1168, 1, 0
        %v1297 = vsel %vm1169, 1, 0
        %v1298 = vsel %vm1170, 1, 0
        %v1299 = vsel %vm1171, 1, 0
        %v1300 = vsel %vm1172, 1, 0
        %v1301 = vsel %vm1173, 1, 0
        %v1302 = vsel %vm1174, 1, 0
        %v1303 = vsel %vm1175, 1, 0
        %v1304 = vsel %vm1176, 1, 0
        %v1305 = vsel %vm1177, 1, 0
        %v1306 = vsel %vm1178, 1, 0
        %v1307 = vsel %vm1179, 1, 0
        %v1308 = vsel %vm1180, 1, 0
        %v1309 = vsel %vm1181, 1, 0
        %v1310 = vsel %vm1182, 1, 0
        %v1311 = vsel %vm1183, 1, 0
        %v1312 = vsel %vm1184, 1, 0
        %v1313 = vsel %vm1185, 1, 0
        %v1314 = vsel %vm1186, 1, 0
        %v1315 = vcvt.s32.f32 %v1187
        %v1316 = vcvt.s32.f32 %v1188
        %v1317 = vcvt.s32.f32 %v1189
        %v1318 = vcvt.s32.f32 %v1190
        %v1319 = vcvt.s32.f32 %v1191
        %v1320 = vcvt.s32.f32 %v1192
        %v1321 = vcvt.s32.f32 %v1193
        %v1322 = vcvt.s32.f32 %v1194
        %v1323 = vcvt.s32.f32 %v1195
        %v1324 = vcvt.s32.f32 %v1196
        %v1325 = vcvt.s32.f32 %v1197
        %v1326 = vcvt.s32.f32 %v1198
        %v1327 = vcvt.s32.f32 %v1199
        %v1328 = vcvt.s32.f32 %v1200
        %v1329 = vcvt.s32.f32 %v1201
        %v1330 = vcvt.s32.f32 %v1202
        %v1331 = vcvt.s32.f32 %v1203
        %v1332 = vcvt.s32.f32 %v1204
        %v1333 = vcvt.s32.f32 %v1205
        %v1334 = vcvt.s32.f32 %v1206
        %v1335 = vcvt.s32.f32 %v1207
        %v1336 = vcvt.s32.f32 %v1208
        %v1337 = vcvt.s32.f32 %v1209
        %v1338 = vcvt.s32.f32 %v1210
        %v1339 = vcvt.s32.f32 %v1211
        %v1340 = vcvt.s32.f32 %v1212
        %v1341 = vcvt.s32.f32 %v1213
        %v1342 = vcvt.s32.f32 %v1214
        %v1343 = vcvt.s32.f32 %v1215
        %v1344 = vcvt.s32.f32 %v1216
        %v1345 = vcvt.s32.f32 %v1217
        %v1346 = vcvt.s32.f32 %v1218
        %v1347 = vcvt.s32.f32 %v1219
        %v1348 = vcvt.s32.f32 %v1220
        %v1349 = vcvt.s32.f32 %v1221
        %v1350 = vcvt.s32.f32 %v1222
        %v1351 = vcvt.s32.f32 %v1223
        %v1352 = vcvt.s32.f32 %v1224
        %v1353 = vcvt.s32.f32 %v1225
        %v1354 = vcvt.s32.f32 %v1226
        %v1355 = vcvt.s32.f32 %v1227
        %v1356 = vcvt.s32.f32 %v1228
        %v1357 = vcvt.s32.f32 %v1229
        %v1358 = vcvt.s32.f32 %v1230
        %v1359 = vcvt.s32.f32 %v1231
        %v1360 = vcvt.s32.f32 %v1232
        %v1361 = vcvt.s32.f32 %v1233
        %v1362 = vcvt.s32.f32 %v1234
        %v1363 = vcvt.s32.f32 %v1235
        %v1364 = vcvt.s32.f32 %v1236
        %v1365 = vcvt.s32.f32 %v1237
        %v1366 = vcvt.s32.f32 %v1238
        %v1367 = vcvt.s32.f32 %v1239
        %v1368 = vcvt.s32.f32 %v1240
        %v1369 = vcvt.s32.f32 %v1241
        %v1370 = vcvt.s32.f32 %v1242
        %v1371 = vcvt.s32.f32 %v1243
        %v1372 = vcvt.s32.f32 %v1244
        %v1373 = vcvt.s32.f32 %v1245
        %v1374 = vcvt.s32.f32 %v1246
        %v1375 = vcvt.s32.f32 %v1247
        %v1376 = vcvt.s32.f32 %v1248
        %v1377 = vcvt.s32.f32 %v1249
        %v1378 = vcvt.s32.f32 %v1250
        %v1379 = vcvt.s32.f32 %v1251
        %v1380 = vcvt.s32.f32 %v1252
        %v1381 = vcvt.s32.f32 %v1253
        %v1382 = vcvt.s32.f32 %v1254
        %v1383 = vcvt.s32.f32 %v1255
        %v1384 = vcvt.s32.f32 %v1256
        %v1385 = vcvt.s32.f32 %v1257
        %v1386 = vcvt.s32.f32 %v1258
        %v1387 = vcvt.s32.f32 %v1259
        %v1388 = vcvt.s32.f32 %v1260
        %v1389 = vcvt.s32.f32 %v1261
        %v1390 = vcvt.s32.f32 %v1262
        %v1391 = vcvt.s32.f32 %v1263
        %v1392 = vcvt.s32.f32 %v1264
        %v1393 = vcvt.s32.f32 %v1265
        %v1394 = vcvt.s32.f32 %v1266
        %v1395 = vcvt.s32.f32 %v1267
        %v1396 = vcvt.s32.f32 %v1268
        %v1397 = vcvt.s32.f32 %v1269
        %v1398 = vcvt.s32.f32 %v1270
        %v1399 = vcvt.s32.f32 %v1271
        %v1400 = vcvt.s32.f32 %v1272
        %v1401 = vcvt.s32.f32 %v1273
        %v1402 = vcvt.s32.f32 %v1274
        %v1403 = vcvt.s32.f32 %v1275
        %v1404 = vcvt.s32.f32 %v1276
        %v1405 = vcvt.s32.f32 %v1277
        %v1406 = vcvt.s32.f32 %v1278
        %v1407 = vcvt.s32.f32 %v1279
        %v1408 = vcvt.s32.f32 %v1280
        %v1409 = vcvt.s32.f32 %v1281
        %v1410 = vcvt.s32.f32 %v1282
        %v1411 = vcvt.s32.f32 %v1283
        %v1412 = vcvt.s32.f32 %v1284
        %v1413 = vcvt.s32.f32 %v1285
        %v1414 = vcvt.s32.f32 %v1286
        %v1415 = vcvt.s32.f32 %v1287
        %v1416 = vcvt.s32.f32 %v1288
        %v1417 = vcvt.s32.f32 %v1289
        %v1418 = vcvt.s32.f32 %v1290
        %v1419 = vcvt.s32.f32 %v1291
        %v1420 = vcvt.s32.f32 %v1292
        %v1421 = vcvt.s32.f32 %v1293
        %v1422 = vcvt.s32.f32 %v1294
        %v1423 = vcvt.s32.f32 %v1295
        %v1424 = vcvt.s32.f32 %v1296
        %v1425 = vcvt.s32.f32 %v1297
        %v1426 = vcvt.s32.f32 %v1298
        %v1427 = vcvt.s32.f32 %v1299
        %v1428 = vcvt.s32.f32 %v1300
        %v1429 = vcvt.s32.f32 %v1301
        %v1430 = vcvt.s32.f32 %v1302
        %v1431 = vcvt.s32.f32 %v1303
        %v1432 = vcvt.s32.f32 %v1304
        %v1433 = vcvt.s32.f32 %v1305
        %v1434 = vcvt.s32.f32 %v1306
        %v1435 = vcvt.s32.f32 %v1307
        %v1436 = vcvt.s32.f32 %v1308
        %v1437 = vcvt.s32.f32 %v1309
        %v1438 = vcvt.s32.f32 %v1310
        %v1439 = vcvt.s32.f32 %v1311
        %v1440 = vcvt.s32.f32 %v1312
        %v1441 = vcvt.s32.f32 %v1313
        %v1442 = vcvt.s32.f32 %v1314
        %v1443 = vpack.c.bf16 %v1319, %v1315
        %v1444 = vpack.c.bf16 %v1320, %v1316
        %v1445 = vpack.c.bf16 %v1321, %v1317
        %v1446 = vpack.c.bf16 %v1322, %v1318
        %v1447 = vpack.c.bf16 %v1327, %v1323
        %v1448 = vpack.c.bf16 %v1328, %v1324
        %v1449 = vpack.c.bf16 %v1329, %v1325
        %v1450 = vpack.c.bf16 %v1330, %v1326
        %v1451 = vpack.c.bf16 %v1335, %v1331
        %v1452 = vpack.c.bf16 %v1336, %v1332
        %v1453 = vpack.c.bf16 %v1337, %v1333
        %v1454 = vpack.c.bf16 %v1338, %v1334
        %v1455 = vpack.c.bf16 %v1343, %v1339
        %v1456 = vpack.c.bf16 %v1344, %v1340
        %v1457 = vpack.c.bf16 %v1345, %v1341
        %v1458 = vpack.c.bf16 %v1346, %v1342
        %v1459 = vpack.c.bf16 %v1351, %v1347
        %v1460 = vpack.c.bf16 %v1352, %v1348
        %v1461 = vpack.c.bf16 %v1353, %v1349
        %v1462 = vpack.c.bf16 %v1354, %v1350
        %v1463 = vpack.c.bf16 %v1359, %v1355
        %v1464 = vpack.c.bf16 %v1360, %v1356
        %v1465 = vpack.c.bf16 %v1361, %v1357
        %v1466 = vpack.c.bf16 %v1362, %v1358
        %v1467 = vpack.c.bf16 %v1367, %v1363
        %v1468 = vpack.c.bf16 %v1368, %v1364
        %v1469 = vpack.c.bf16 %v1369, %v1365
        %v1470 = vpack.c.bf16 %v1370, %v1366
        %v1471 = vpack.c.bf16 %v1375, %v1371
        %v1472 = vpack.c.bf16 %v1376, %v1372
        %v1473 = vpack.c.bf16 %v1377, %v1373
        %v1474 = vpack.c.bf16 %v1378, %v1374
        %v1475 = vpack.c.bf16 %v1383, %v1379
        %v1476 = vpack.c.bf16 %v1384, %v1380
        %v1477 = vpack.c.bf16 %v1385, %v1381
        %v1478 = vpack.c.bf16 %v1386, %v1382
        %v1479 = vpack.c.bf16 %v1391, %v1387
        %v1480 = vpack.c.bf16 %v1392, %v1388
        %v1481 = vpack.c.bf16 %v1393, %v1389
        %v1482 = vpack.c.bf16 %v1394, %v1390
        %v1483 = vpack.c.bf16 %v1399, %v1395
        %v1484 = vpack.c.bf16 %v1400, %v1396
        %v1485 = vpack.c.bf16 %v1401, %v1397
        %v1486 = vpack.c.bf16 %v1402, %v1398
        %v1487 = vpack.c.bf16 %v1407, %v1403
        %v1488 = vpack.c.bf16 %v1408, %v1404
        %v1489 = vpack.c.bf16 %v1409, %v1405
        %v1490 = vpack.c.bf16 %v1410, %v1406
        %v1491 = vpack.c.bf16 %v1415, %v1411
        %v1492 = vpack.c.bf16 %v1416, %v1412
        %v1493 = vpack.c.bf16 %v1417, %v1413
        %v1494 = vpack.c.bf16 %v1418, %v1414
        %v1495 = vpack.c.bf16 %v1423, %v1419
        %v1496 = vpack.c.bf16 %v1424, %v1420
        %v1497 = vpack.c.bf16 %v1425, %v1421
        %v1498 = vpack.c.bf16 %v1426, %v1422
        %v1499 = vpack.c.bf16 %v1431, %v1427
        %v1500 = vpack.c.bf16 %v1432, %v1428
        %v1501 = vpack.c.bf16 %v1433, %v1429
        %v1502 = vpack.c.bf16 %v1434, %v1430
        %v1503 = vpack.c.bf16 %v1439, %v1435
        %v1504 = vpack.c.bf16 %v1440, %v1436
        %v1505 = vpack.c.bf16 %v1441, %v1437
        %v1506 = vpack.c.bf16 %v1442, %v1438
        %v1507 = vld [vmem:[%s4] sm:$0xff]
        %v1508 = vld [vmem:[%s4 + $0x8] sm:$0xff]
        %v1509 = vld [vmem:[%s4 + $0x10] sm:$0xff]
        %v1510 = vld [vmem:[%s4 + $0x18] sm:$0xff]
        %v1515 = vunpack.c.l.b16 %v1507
        %v1516 = vunpack.c.h.b16 %v1507
        %v1517 = vunpack.c.l.b16 %v1508
        %v1518 = vunpack.c.h.b16 %v1508
        %v1519 = vunpack.c.l.b16 %v1509
        %v1520 = vunpack.c.h.b16 %v1509
        %v1521 = vunpack.c.l.b16 %v1510
        %v1522 = vunpack.c.h.b16 %v1510
        %v1523 = vpack.c.b16 %v1517, %v1515
        %v1524 = vpack.c.b16 %v1518, %v1516
        %v1525 = vpack.c.b16 %v1521, %v1519
        %v1526 = vpack.c.b16 %v1522, %v1520
        %1531 = vmatpush.bf16.msra.mxu0 %v1471
        %1532 = vmatpush.bf16.msra.mxu0 %v1467
        %1533 = vmatpush.bf16.msra.mxu0 %v1463
        %1534 = vmatpush.bf16.msra.mxu0 %v1459
        %1535 = vmatpush.bf16.msra.mxu0 %v1455
        %1536 = vmatpush.bf16.msra.mxu0 %v1451
        %1537 = vmatpush.bf16.msra.mxu0 %v1447
        %1538 = vmatpush.bf16.msra.mxu0 %v1443
        %1539 = vmatmul.bf16.gmra.mxu0 %v1523
        %v1540 = vpop.f32.mrf.mxu0
        %v1541 = vadd.f32 0.0, %v1540
        %v1542 = vpop.f32.mrf.mxu0
        %v1543 = vadd.f32 0.0, %v1542
        %1544 = vmatmul.bf16.gmra.mxu0 %v1525
        %v1545 = vpop.f32.mrf.mxu0
        %v1546 = vadd.f32 0.0, %v1545
        %v1547 = vpop.f32.mrf.mxu0
        %v1548 = vadd.f32 0.0, %v1547
        %1549 = vdwg.mxu0
        %1550 = vmatpush.bf16.msra.mxu0 %v1503
        %1551 = vmatpush.bf16.msra.mxu0 %v1499
        %1552 = vmatpush.bf16.msra.mxu0 %v1495
        %1553 = vmatpush.bf16.msra.mxu0 %v1491
        %1554 = vmatpush.bf16.msra.mxu0 %v1487
        %1555 = vmatpush.bf16.msra.mxu0 %v1483
        %1556 = vmatpush.bf16.msra.mxu0 %v1479
        %1557 = vmatpush.bf16.msra.mxu0 %v1475
        %1558 = vmatmul.bf16.gmra.mxu0 %v1524
        %v1559 = vpop.f32.mrf.mxu0
        %v1560 = vadd.f32 %v1541, %v1559
        %v1561 = vpop.f32.mrf.mxu0
        %v1562 = vadd.f32 %v1543, %v1561
        %1563 = vmatmul.bf16.gmra.mxu0 %v1526
        %v1564 = vpop.f32.mrf.mxu0
        %v1565 = vadd.f32 %v1546, %v1564
        %v1566 = vpop.f32.mrf.mxu0
        %v1567 = vadd.f32 %v1548, %v1566
        %1568 = vdwg.mxu0
        %1569 = vmatpush.bf16.msra.mxu0 %v1472
        %1570 = vmatpush.bf16.msra.mxu0 %v1468
        %1571 = vmatpush.bf16.msra.mxu0 %v1464
        %1572 = vmatpush.bf16.msra.mxu0 %v1460
        %1573 = vmatpush.bf16.msra.mxu0 %v1456
        %1574 = vmatpush.bf16.msra.mxu0 %v1452
        %1575 = vmatpush.bf16.msra.mxu0 %v1448
        %1576 = vmatpush.bf16.msra.mxu0 %v1444
        %1577 = vmatmul.bf16.gmra.mxu0 %v1523
        %v1578 = vpop.f32.mrf.mxu0
        %v1579 = vadd.f32 0.0, %v1578
        %v1580 = vpop.f32.mrf.mxu0
        %v1581 = vadd.f32 0.0, %v1580
        %1582 = vmatmul.bf16.gmra.mxu0 %v1525
        %v1583 = vpop.f32.mrf.mxu0
        %v1584 = vadd.f32 0.0, %v1583
        %v1585 = vpop.f32.mrf.mxu0
        %v1586 = vadd.f32 0.0, %v1585
        %1587 = vdwg.mxu0
        %1588 = vmatpush.bf16.msra.mxu0 %v1504
        %1589 = vmatpush.bf16.msra.mxu0 %v1500
        %1590 = vmatpush.bf16.msra.mxu0 %v1496
        %1591 = vmatpush.bf16.msra.mxu0 %v1492
        %1592 = vmatpush.bf16.msra.mxu0 %v1488
        %1593 = vmatpush.bf16.msra.mxu0 %v1484
        %1594 = vmatpush.bf16.msra.mxu0 %v1480
        %1595 = vmatpush.bf16.msra.mxu0 %v1476
        %1596 = vmatmul.bf16.gmra.mxu0 %v1524
        %v1597 = vpop.f32.mrf.mxu0
        %v1598 = vadd.f32 %v1579, %v1597
        %v1599 = vpop.f32.mrf.mxu0
        %v1600 = vadd.f32 %v1581, %v1599
        %1601 = vmatmul.bf16.gmra.mxu0 %v1526
        %v1602 = vpop.f32.mrf.mxu0
        %v1603 = vadd.f32 %v1584, %v1602
        %v1604 = vpop.f32.mrf.mxu0
        %v1605 = vadd.f32 %v1586, %v1604
        %1606 = vdwg.mxu0
        %1607 = vmatpush.bf16.msra.mxu0 %v1473
        %1608 = vmatpush.bf16.msra.mxu0 %v1469
        %1609 = vmatpush.bf16.msra.mxu0 %v1465
        %1610 = vmatpush.bf16.msra.mxu0 %v1461
        %1611 = vmatpush.bf16.msra.mxu0 %v1457
        %1612 = vmatpush.bf16.msra.mxu0 %v1453
        %1613 = vmatpush.bf16.msra.mxu0 %v1449
        %1614 = vmatpush.bf16.msra.mxu0 %v1445
        %1615 = vmatmul.bf16.gmra.mxu0 %v1523
        %v1616 = vpop.f32.mrf.mxu0
        %v1617 = vadd.f32 0.0, %v1616
        %v1618 = vpop.f32.mrf.mxu0
        %v1619 = vadd.f32 0.0, %v1618
        %1620 = vmatmul.bf16.gmra.mxu0 %v1525
        %v1621 = vpop.f32.mrf.mxu0
        %v1622 = vadd.f32 0.0, %v1621
        %v1623 = vpop.f32.mrf.mxu0
        %v1624 = vadd.f32 0.0, %v1623
        %1625 = vdwg.mxu0
        %1626 = vmatpush.bf16.msra.mxu0 %v1505
        %1627 = vmatpush.bf16.msra.mxu0 %v1501
        %1628 = vmatpush.bf16.msra.mxu0 %v1497
        %1629 = vmatpush.bf16.msra.mxu0 %v1493
        %1630 = vmatpush.bf16.msra.mxu0 %v1489
        %1631 = vmatpush.bf16.msra.mxu0 %v1485
        %1632 = vmatpush.bf16.msra.mxu0 %v1481
        %1633 = vmatpush.bf16.msra.mxu0 %v1477
        %1634 = vmatmul.bf16.gmra.mxu0 %v1524
        %v1635 = vpop.f32.mrf.mxu0
        %v1636 = vadd.f32 %v1617, %v1635
        %v1637 = vpop.f32.mrf.mxu0
        %v1638 = vadd.f32 %v1619, %v1637
        %1639 = vmatmul.bf16.gmra.mxu0 %v1526
        %v1640 = vpop.f32.mrf.mxu0
        %v1641 = vadd.f32 %v1622, %v1640
        %v1642 = vpop.f32.mrf.mxu0
        %v1643 = vadd.f32 %v1624, %v1642
        %1644 = vdwg.mxu0
        %1645 = vmatpush.bf16.msra.mxu0 %v1474
        %1646 = vmatpush.bf16.msra.mxu0 %v1470
        %1647 = vmatpush.bf16.msra.mxu0 %v1466
        %1648 = vmatpush.bf16.msra.mxu0 %v1462
        %1649 = vmatpush.bf16.msra.mxu0 %v1458
        %1650 = vmatpush.bf16.msra.mxu0 %v1454
        %1651 = vmatpush.bf16.msra.mxu0 %v1450
        %1652 = vmatpush.bf16.msra.mxu0 %v1446
        %1653 = vmatmul.bf16.gmra.mxu0 %v1523
        %v1654 = vpop.f32.mrf.mxu0
        %v1655 = vadd.f32 0.0, %v1654
        %v1656 = vpop.f32.mrf.mxu0
        %v1657 = vadd.f32 0.0, %v1656
        %1658 = vmatmul.bf16.gmra.mxu0 %v1525
        %v1659 = vpop.f32.mrf.mxu0
        %v1660 = vadd.f32 0.0, %v1659
        %v1661 = vpop.f32.mrf.mxu0
        %v1662 = vadd.f32 0.0, %v1661
        %1663 = vdwg.mxu0
        %1664 = vmatpush.bf16.msra.mxu0 %v1506
        %1665 = vmatpush.bf16.msra.mxu0 %v1502
        %1666 = vmatpush.bf16.msra.mxu0 %v1498
        %1667 = vmatpush.bf16.msra.mxu0 %v1494
        %1668 = vmatpush.bf16.msra.mxu0 %v1490
        %1669 = vmatpush.bf16.msra.mxu0 %v1486
        %1670 = vmatpush.bf16.msra.mxu0 %v1482
        %1671 = vmatpush.bf16.msra.mxu0 %v1478
        %1672 = vmatmul.bf16.gmra.mxu0 %v1524
        %v1673 = vpop.f32.mrf.mxu0
        %v1674 = vadd.f32 %v1655, %v1673
        %v1675 = vpop.f32.mrf.mxu0
        %v1676 = vadd.f32 %v1657, %v1675
        %1677 = vmatmul.bf16.gmra.mxu0 %v1526
        %v1678 = vpop.f32.mrf.mxu0
        %v1679 = vadd.f32 %v1660, %v1678
        %v1680 = vpop.f32.mrf.mxu0
        %v1681 = vadd.f32 %v1662, %v1680
        %1682 = vdwg.mxu0
        %v1683 = vld [vmem:[%s5] sm:$0x1]
        %v1684 = vmul.f32 %v932, %v1560
        %v1685 = vmul.f32 %v970, %v1598
        %v1686 = vmul.f32 %v1008, %v1636
        %v1687 = vmul.f32 %v1046, %v1674
        %v1688 = vmul.f32 %v934, %v1562
        %v1689 = vmul.f32 %v972, %v1600
        %v1690 = vmul.f32 %v1010, %v1638
        %v1691 = vmul.f32 %v1048, %v1676
        %v1692 = vmul.f32 %v937, %v1565
        %v1693 = vmul.f32 %v975, %v1603
        %v1694 = vmul.f32 %v1013, %v1641
        %v1695 = vmul.f32 %v1051, %v1679
        %v1696 = vmul.f32 %v939, %v1567
        %v1697 = vmul.f32 %v977, %v1605
        %v1698 = vmul.f32 %v1015, %v1643
        %v1699 = vmul.f32 %v1053, %v1681
        %s1700 = sld [smem:[#allocation2]]
        %v1701 = vstv %s1700
        %vm1702 = vcmask 261120
        %v1704 = vsel %vm1702, %v1683, 0
        %1706 = vmatpush.msra.mxu0 0.0
        %1707 = vmatpush.msra.mxu0 0.0
        %1708 = vmatpush.msra.mxu0 0.0
        %1709 = vmatpush.msra.mxu0 0.0
        %1710 = vmatpush.msra.mxu0 0.0
        %1711 = vmatpush.msra.mxu0 0.0
        %1712 = vmatpush.msra.mxu0 0.0
        %1713 = vmatpush.msra.mxu0 0.0
        %1714 = vmatpush.msra.mxu0 0.0
        %1715 = vmatpush.msra.mxu0 0.0
        %1716 = vmatpush.msra.mxu0 0.0
        %1717 = vmatpush.msra.mxu0 0.0
        %1718 = vmatpush.msra.mxu0 %v1696
        %1719 = vmatpush.msra.mxu0 %v1692
        %1720 = vmatpush.msra.mxu0 %v1688
        %1721 = vmatpush.msra.mxu0 %v1684
        %1722 = vmatmul.f32.gmra.mxu0 %v1704
        %v1723 = vpop.f32.mrf.mxu0
        %v1724 = vadd.f32 %v1701, %v1723
        %1725 = vdwg.mxu0
        %1726 = vmatpush.msra.mxu0 0.0
        %1727 = vmatpush.msra.mxu0 0.0
        %1728 = vmatpush.msra.mxu0 0.0
        %1729 = vmatpush.msra.mxu0 0.0
        %1730 = vmatpush.msra.mxu0 0.0
        %1731 = vmatpush.msra.mxu0 0.0
        %1732 = vmatpush.msra.mxu0 0.0
        %1733 = vmatpush.msra.mxu0 0.0
        %1734 = vmatpush.msra.mxu0 0.0
        %1735 = vmatpush.msra.mxu0 0.0
        %1736 = vmatpush.msra.mxu0 0.0
        %1737 = vmatpush.msra.mxu0 0.0
        %1738 = vmatpush.msra.mxu0 %v1697
        %1739 = vmatpush.msra.mxu0 %v1693
        %1740 = vmatpush.msra.mxu0 %v1689
        %1741 = vmatpush.msra.mxu0 %v1685
        %1742 = vmatmul.f32.gmra.mxu0 %v1704
        %v1743 = vpop.f32.mrf.mxu0
        %v1744 = vadd.f32 %v1701, %v1743
        %1745 = vdwg.mxu0
        %1746 = vmatpush.msra.mxu0 0.0
        %1747 = vmatpush.msra.mxu0 0.0
        %1748 = vmatpush.msra.mxu0 0.0
        %1749 = vmatpush.msra.mxu0 0.0
        %1750 = vmatpush.msra.mxu0 0.0
        %1751 = vmatpush.msra.mxu0 0.0
        %1752 = vmatpush.msra.mxu0 0.0
        %1753 = vmatpush.msra.mxu0 0.0
        %1754 = vmatpush.msra.mxu0 0.0
        %1755 = vmatpush.msra.mxu0 0.0
        %1756 = vmatpush.msra.mxu0 0.0
        %1757 = vmatpush.msra.mxu0 0.0
        %1758 = vmatpush.msra.mxu0 %v1698
        %1759 = vmatpush.msra.mxu0 %v1694
        %1760 = vmatpush.msra.mxu0 %v1690
        %1761 = vmatpush.msra.mxu0 %v1686
        %1762 = vmatmul.f32.gmra.mxu0 %v1704
        %v1763 = vpop.f32.mrf.mxu0
        %v1764 = vadd.f32 %v1701, %v1763
        %1765 = vdwg.mxu0
        %1766 = vmatpush.msra.mxu0 0.0
        %1767 = vmatpush.msra.mxu0 0.0
        %1768 = vmatpush.msra.mxu0 0.0
        %1769 = vmatpush.msra.mxu0 0.0
        %1770 = vmatpush.msra.mxu0 0.0
        %1771 = vmatpush.msra.mxu0 0.0
        %1772 = vmatpush.msra.mxu0 0.0
        %1773 = vmatpush.msra.mxu0 0.0
        %1774 = vmatpush.msra.mxu0 0.0
        %1775 = vmatpush.msra.mxu0 0.0
        %1776 = vmatpush.msra.mxu0 0.0
        %1777 = vmatpush.msra.mxu0 0.0
        %1778 = vmatpush.msra.mxu0 %v1699
        %1779 = vmatpush.msra.mxu0 %v1695
        %1780 = vmatpush.msra.mxu0 %v1691
        %1781 = vmatpush.msra.mxu0 %v1687
        %1782 = vmatmul.f32.gmra.mxu0 %v1704
        %v1783 = vpop.f32.mrf.mxu0
        %v1784 = vadd.f32 %v1701, %v1783
        %1785 = vdwg.mxu0
        %v1786 = vxor.u32 %v1724, 2147483648
        %v1787 = vxor.u32 %v1744, 2147483648
        %v1788 = vxor.u32 %v1764, 2147483648
        %v1789 = vxor.u32 %v1784, 2147483648
        %v1790 = vmul.f32 %v1786, 1.442695
        %v1791 = vpow.pop %v1790
        %v1792 = vmul.f32 %v1787, 1.442695
        %v1793 = vpow.pop %v1792
        %v1794 = vmul.f32 %v1788, 1.442695
        %v1795 = vpow.pop %v1794
        %v1796 = vmul.f32 %v1789, 1.442695
        %v1797 = vpow.pop %v1796
        %v1798 = vadd.f32 %v1791, 1.0
        %v1799 = vadd.f32 %v1793, 1.0
        %v1800 = vadd.f32 %v1795, 1.0
        %v1801 = vadd.f32 %v1797, 1.0
        %v1802 = vrcp.pop %v1798
        %v1803 = vmul.f32 %v1798, %v1802
        %v1804 = vsub.f32 1.0, %v1803
        %v1805 = vmul.f32 %v1802, %v1804
        %v1806 = vadd.f32 %v1802, %v1805
        %vm1807 = vweird.f32 %v1798
        %vm1808 = vweird.f32 %v1802
        %vm1809 = vmor %vm1807, %vm1808
        %v1810 = vsel %vm1809, %v1802, %v1806
        %v1811 = vand.u32 2147483647, %v1798
        %vm1812 = vcmp.eq.f32.partialorder %v1811, 8.507059e+37
        %v1813 = vand.u32 %v1798, 2147483648
        %v1814 = vor.u32 1.1754944e-38, %v1813
        %v1815 = vsel %vm1812, %v1814, %v1810
        %v1816 = vmul.f32 1.0, %v1815
        %v1817 = vrcp.pop %v1799
        %v1818 = vmul.f32 %v1799, %v1817
        %v1819 = vsub.f32 1.0, %v1818
        %v1820 = vmul.f32 %v1817, %v1819
        %v1821 = vadd.f32 %v1817, %v1820
        %vm1822 = vweird.f32 %v1799
        %vm1823 = vweird.f32 %v1817
        %vm1824 = vmor %vm1822, %vm1823
        %v1825 = vsel %vm1824, %v1817, %v1821
        %v1826 = vand.u32 2147483647, %v1799
        %vm1827 = vcmp.eq.f32.partialorder %v1826, 8.507059e+37
        %v1828 = vand.u32 %v1799, 2147483648
        %v1829 = vor.u32 1.1754944e-38, %v1828
        %v1830 = vsel %vm1827, %v1829, %v1825
        %v1831 = vmul.f32 1.0, %v1830
        %v1832 = vrcp.pop %v1800
        %v1833 = vmul.f32 %v1800, %v1832
        %v1834 = vsub.f32 1.0, %v1833
        %v1835 = vmul.f32 %v1832, %v1834
        %v1836 = vadd.f32 %v1832, %v1835
        %vm1837 = vweird.f32 %v1800
        %vm1838 = vweird.f32 %v1832
        %vm1839 = vmor %vm1837, %vm1838
        %v1840 = vsel %vm1839, %v1832, %v1836
        %v1841 = vand.u32 2147483647, %v1800
        %vm1842 = vcmp.eq.f32.partialorder %v1841, 8.507059e+37
        %v1843 = vand.u32 %v1800, 2147483648
        %v1844 = vor.u32 1.1754944e-38, %v1843
        %v1845 = vsel %vm1842, %v1844, %v1840
        %v1846 = vmul.f32 1.0, %v1845
        %v1847 = vrcp.pop %v1801
        %v1848 = vmul.f32 %v1801, %v1847
        %v1849 = vsub.f32 1.0, %v1848
        %v1850 = vmul.f32 %v1847, %v1849
        %v1851 = vadd.f32 %v1847, %v1850
        %vm1852 = vweird.f32 %v1801
        %vm1853 = vweird.f32 %v1847
        %vm1854 = vmor %vm1852, %vm1853
        %v1855 = vsel %vm1854, %v1847, %v1851
        %v1856 = vand.u32 2147483647, %v1801
        %vm1857 = vcmp.eq.f32.partialorder %v1856, 8.507059e+37
        %v1858 = vand.u32 %v1801, 2147483648
        %v1859 = vor.u32 1.1754944e-38, %v1858
        %v1860 = vsel %vm1857, %v1859, %v1855
        %v1861 = vmul.f32 1.0, %v1860
        %v1866 = vrot.slane %v1831, 7
        %v1867 = vrot.slane %v1846, 6
        %v1868 = vrot.slane %v1861, 5
        %vm1869 = vcmask 1040384
        %v1870 = vsel %vm1869, %v1816, %v1866
        %vm1871 = vcmask 1042434
        %v1872 = vsel %vm1871, %v1867, %v1868
        %vm1873 = vcmask 1041408
        %v1874 = vsel %vm1873, %v1870, %v1872
        %v1876 = vlaneseq
        %vm1877 = vcmp.ge.s32.totalorder %v1876, 0
        %vm1878 = vcmp.lt.s32.totalorder %v1876, 512
        %vm1879 = vmand %vm1877, %vm1878
        %1880 = vst.msk [vmem:[%s285] sm:$0xf] %vm1879, %v1874
        %s1881 = sand.u32 %s187, 1
        %s1882 = scalar_lea.sflag [#allocation4], %s1881
        %s1883 = sand.u32 %s187, 1
        %s1884 = smul.addr %s1883, 4
        %s1885 = scalar_lea.vmem [#allocation3], %s1884
        // Predicated region
        $region49: #{tpu_custom_call.1} parent=47 // pred_check
          %p1886 = pneg %p197
        $region50: #{tpu_custom_call.1} parent=47 // pred_check_branch
          %1888 = sbr.rel (%p1886) target = $region52
        $region51: #{tpu_custom_call.1} parent=47 // pred_region
          %s1889 = smul.u32 4, %s22
          %1891 = vsyncadd %s1882, 0
          %s1892 = scalar_lea.hbm %s7, %s1889
          %s1894 = sshll.u32 %s1885, 4
          %s1895 = int_to_ptr.vmem [resolvable:$true] %s1894
          %s1896 = sshll.u32 %s1892, 4
          %s1897 = int_to_ptr.hbm [resolvable:$true] %s1896
          %1899 = dma.vmem_to_hbm [thread:$0]  %s1895, 64, %s1897, %s1882
        $region52: #{tpu_custom_call.1} parent=47 // pred_fallthru
          _
      $region48: #{tpu_custom_call.1} parent=5 // pred_fallthru
        _
      %p1900 = scmp.le.s32.totalorder 2, %s17
      // Predicated region
      $region53: #{tpu_custom_call.1} parent=5 // pred_check
        %p1901 = pneg %p1900
      $region54: #{tpu_custom_call.1} parent=5 // pred_check_branch
        %1903 = sbr.rel (%p1901) target = $region56
      $region55: #{tpu_custom_call.1} parent=5 // pred_region
        %s1904 = ssub.s32 %s17, 2
        // Predicated region
        $region57: #{tpu_custom_call.1} parent=55 // pred_check
          %p1905 = pneg %p203
        $region58: #{tpu_custom_call.1} parent=55 // pred_check_branch
          %1907 = sbr.rel (%p1905) target = $region60
        $region59: #{tpu_custom_call.1} parent=55 // pred_region
          %s1908 = sand.u32 %s188, 1
          %s1909 = scalar_lea.sflag [#allocation4], %s1908
          %s1910 = sand.u32 %s188, 1
          %s1911 = smul.addr %s1910, 4
          %s1912 = scalar_lea.vmem [#allocation3], %s1911
          %1914 = dma.done %s1909, 64
        $region60: #{tpu_custom_call.1} parent=55 // pred_fallthru
          _
      $region56: #{tpu_custom_call.1} parent=5 // pred_fallthru
        _
    $region6: #{tpu_custom_call.1} parent=1 // loop_footer
      %s21 = sadd.s32 1, %s17
    $region7: #{tpu_custom_call.1} parent=1 // loop_footer_branch
      %16 = sbr.rel target = $region3
    $region8: #{tpu_custom_call.1} parent=1 // loop_exit
      _
    %1915 = vsyncpa [#allocation4], 1
    %s1916 = scalar_lea.sflag [#allocation4], 1
    %1917 = vsyncpa %s1916, 1

</llo_original>
